<compile_context>
chip_gen: v6e
topology: v6e:2x2x1
jax: 0.10.0
libtpu: 0.0.40
codegen_flags: <defaults>
</compile_context>

<pallas_src>
import jax
import jax.numpy as jnp
from jax import lax
from jax.experimental import pallas as pl
from jax.experimental.pallas import tpu as pltpu


def rnn_kernel(x_ref, h_init_ref,
               w_ih0_ref, w_hh0_ref, b0_ref,
               w_ih1_ref, w_hh1_ref, b1_ref,
               w_out_ref, b_out_ref,
               out_ref,
               pre_ref):
    """Whole-sequence 2-layer vanilla RNN + final Linear, single grid point.

    pre_ref: (T, B, H) VMEM scratch, reused for
      phase 1: layer-0 pre-activations, phase 2: h0(t) sequence,
      phase 3: layer-1 pre-activations.
    """
    T, B, I = x_ref.shape
    H = w_hh0_ref.shape[0]
    unroll = min(T, 8)

    # ---- Phase 1: layer-0 input projection as ONE large MXU matmul (off chain) ----
    x_flat = x_ref[...].reshape(T * B, I)                               # (T*B, I)
    pre0 = (jnp.dot(x_flat, w_ih0_ref[...],
                    preferred_element_type=jnp.float32)
            + b0_ref[...])                                              # + (b_ih0+b_hh0)
    pre_ref[...] = pre0.reshape(T, B, H)

    # ---- Phase 2: layer-0 recurrence: one HxH dot + tanh per step ----
    # h0(t) overwrites pre_ref[t] in place (its pre-activation is no longer needed).
    def step0(t, h0):
        h0 = jnp.tanh(pre_ref[t]
                      + jnp.dot(h0, w_hh0_ref[...],
                                preferred_element_type=jnp.float32))
        pre_ref[t] = h0
        return h0

    lax.fori_loop(0, T, step0, h_init_ref[0], unroll=unroll)

    # ---- Phase 3: layer-1 input projection hoisted as ONE large matmul ----
    h0_all = pre_ref[...].reshape(T * B, H)                             # h0 sequence
    pre1 = (jnp.dot(h0_all, w_ih1_ref[...],
                    preferred_element_type=jnp.float32)
            + b1_ref[...])                                              # + (b_ih1+b_hh1)
    pre_ref[...] = pre1.reshape(T, B, H)

    # ---- Phase 4: layer-1 recurrence: one HxH dot + tanh per step ----
    def step1(t, h1):
        return jnp.tanh(pre_ref[t]
                        + jnp.dot(h1, w_hh1_ref[...],
                                  preferred_element_type=jnp.float32))

    h1 = lax.fori_loop(0, T, step1, h_init_ref[1], unroll=unroll)

    # ---- Phase 5: final Linear on last-timestep hidden of the top layer ----
    out_ref[...] = (jnp.dot(h1, w_out_ref[...],
                            preferred_element_type=jnp.float32)
                    + b_out_ref[...])


def _rnn_forward(x, params, init_h=None):
    """x: (B, T, input_size) float32.  Returns (B, output_size)."""
    B, T, I = x.shape
    H = params["w_hh0"].shape[0]
    O = params["w_out"].shape[0]
    if init_h is None:
        init_h = jnp.zeros((2, B, H), jnp.float32)

    # Time-major input so per-step reads are contiguous (B,H) tiles; the XLA
    # transpose is a one-time prologue pass, negligible vs the serial recurrence.
    x_tm = jnp.transpose(x, (1, 0, 2))                                  # (T, B, I)

    args = (
        x_tm,
        init_h,
        params["w_ih0"].T,                                              # (I, H)
        params["w_hh0"].T,                                              # (H, H)
        (params["b_ih0"] + params["b_hh0"]).reshape(1, H),
        params["w_ih1"].T,                                              # (H, H)
        params["w_hh1"].T,                                              # (H, H)
        (params["b_ih1"] + params["b_hh1"]).reshape(1, H),
        params["w_out"].T,                                              # (H, O)
        params["b_out"].reshape(1, O),
    )

    # Explicit VMEM budget (clamped to 64 MiB so the same plan is valid on v7x).
    f32 = 4
    logical = f32 * (T * B * I + 2 * B * H + T * B * H
                     + I * H + 3 * H * H + H * O + 2 * H + O + B * O)
    vmem_limit = int(min(64 * 1024 * 1024,
                         max(4 * logical + (4 << 20), 16 << 20)))

    vmem = pl.BlockSpec(memory_space=pltpu.MemorySpace.VMEM)
    return pl.pallas_call(
        rnn_kernel,
        out_shape=jax.ShapeDtypeStruct((B, O), jnp.float32),
        in_specs=[vmem] * len(args),
        out_specs=vmem,
        scratch_shapes=[pltpu.VMEM((T, B, H), jnp.float32)],
        compiler_params=pltpu.CompilerParams(vmem_limit_bytes=vmem_limit),
    )(*args)


# jit the whole wrapper so transpose / weight prep fuse with the pallas_call
rnn_forward = jax.jit(_rnn_forward)


def rnn_reference(x, params, init_h=None):
    """Pure-JAX reference matching nn.RNN(num_layers=2, batch_first=True) + Linear."""
    B, T, I = x.shape
    H = params["w_hh0"].shape[0]
    if init_h is None:
        init_h = jnp.zeros((2, B, H), jnp.float32)
    h0, h1 = init_h[0], init_h[1]
    for t in range(T):
        x_t = x[:, t, :]
        h0 = jnp.tanh(x_t @ params["w_ih0"].T + params["b_ih0"]
                      + h0 @ params["w_hh0"].T + params["b_hh0"])
        h1 = jnp.tanh(h0 @ params["w_ih1"].T + params["b_ih1"]
                      + h1 @ params["w_hh1"].T + params["b_hh1"])
    return h1 @ params["w_out"].T + params["b_out"]


def init_params(key, input_size, hidden_size, output_size):
    """Deterministic init mimicking PyTorch's U(-1/sqrt(H), 1/sqrt(H))."""
    ks = jax.random.split(key, 12)
    s = 1.0 / jnp.sqrt(hidden_size)
    u = lambda k, shape: jax.random.uniform(k, shape, jnp.float32, -s, s)
    return {
        "w_ih0": u(ks[0], (hidden_size, input_size)),
        "w_hh0": u(ks[1], (hidden_size, hidden_size)),
        "b_ih0": u(ks[2], (hidden_size,)),
        "b_hh0": u(ks[3], (hidden_size,)),
        "w_ih1": u(ks[4], (hidden_size, hidden_size)),
        "w_hh1": u(ks[5], (hidden_size, hidden_size)),
        "b_ih1": u(ks[6], (hidden_size,)),
        "b_hh1": u(ks[7], (hidden_size,)),
        "w_out": u(ks[8], (output_size, hidden_size)),
        "b_out": u(ks[9], (output_size,)),
    }


if __name__ == "__main__":
    B, T, INPUT, HIDDEN, OUTPUT = 2, 8, 16, 32, 8

    key = jax.random.PRNGKey(0)
    k_x, k_p = jax.random.split(key)
    x = jax.random.normal(k_x, (B, T, INPUT), jnp.float32)
    params = init_params(k_p, INPUT, HIDDEN, OUTPUT)

    out = rnn_forward(x, params)
    out = jax.block_until_ready(out)

    ref = rnn_reference(x, params)
    assert out.shape == (B, OUTPUT)
    assert jnp.allclose(out, ref, atol=1e-4, rtol=1e-4), "mismatch vs pure-JAX reference"

    print("KERNEL_OK")
</pallas_src>

<mosaic_0001>
module attributes {stable_mosaic.version = 11 : i64} {
  func.func @rnn_kernel(%arg0: memref<8x2x16xf32, #tpu.memory_space<vmem>>, %arg1: memref<2x2x32xf32, #tpu.memory_space<vmem>>, %arg2: memref<16x32xf32, #tpu.memory_space<vmem>>, %arg3: memref<32x32xf32, #tpu.memory_space<vmem>>, %arg4: memref<1x32xf32, #tpu.memory_space<vmem>>, %arg5: memref<32x32xf32, #tpu.memory_space<vmem>>, %arg6: memref<32x32xf32, #tpu.memory_space<vmem>>, %arg7: memref<1x32xf32, #tpu.memory_space<vmem>>, %arg8: memref<32x8xf32, #tpu.memory_space<vmem>>, %arg9: memref<1x8xf32, #tpu.memory_space<vmem>>, %arg10: memref<2x8xf32, #tpu.memory_space<vmem>>, %arg11: memref<8x2x32xf32, #tpu.memory_space<vmem>>) attributes {dimension_semantics = [], scalar_prefetch = 0 : i64, scratch_operands = 1 : i64, tpu.core_type = #tpu.core_type<tc>} {
    %c0 = arith.constant 0 : index
    %c0_0 = arith.constant 0 : index
    %c0_1 = arith.constant 0 : index
    %0 = vector.load %arg0[%c0, %c0_0, %c0_1] : memref<8x2x16xf32, #tpu.memory_space<vmem>>, vector<8x2x16xf32>
    %1 = vector.shape_cast %0 : vector<8x2x16xf32> to vector<16x16xf32>
    %c0_2 = arith.constant 0 : index
    %c0_3 = arith.constant 0 : index
    %2 = vector.load %arg2[%c0_2, %c0_3] : memref<16x32xf32, #tpu.memory_space<vmem>>, vector<16x32xf32>
    %cst = arith.constant dense<0.000000e+00> : vector<16x32xf32>
    %3 = tpu.matmul %1, %2, %cst {dimension_numbers = #tpu.dot_dimension_numbers<[1], [0], [0], [1], [0, 0, 1, 1], [], []>} : vector<16x16xf32>, vector<16x32xf32>, vector<16x32xf32> -> vector<16x32xf32>
    %c0_4 = arith.constant 0 : index
    %c0_5 = arith.constant 0 : index
    %4 = vector.load %arg4[%c0_4, %c0_5] : memref<1x32xf32, #tpu.memory_space<vmem>>, vector<1x32xf32>
    %5 = vector.broadcast %4 : vector<1x32xf32> to vector<16x32xf32>
    %6 = arith.addf %3, %5 : vector<16x32xf32>
    %7 = vector.shape_cast %6 : vector<16x32xf32> to vector<8x2x32xf32>
    %c0_6 = arith.constant 0 : index
    %c0_7 = arith.constant 0 : index
    %c0_8 = arith.constant 0 : index
    %8 = vector.load %arg11[%c0_6, %c0_7, %c0_8] : memref<8x2x32xf32, #tpu.memory_space<vmem>>, vector<8x2x32xf32>
    tpu.vector_store %arg11[%c0_6, %c0_7, %c0_8], %7 {strides = array<i32>} : memref<8x2x32xf32, #tpu.memory_space<vmem>>, vector<8x2x32xf32>,
    %c0_9 = arith.constant 0 : index
    %c0_10 = arith.constant 0 : index
    %c0_11 = arith.constant 0 : index
    %9 = vector.load %arg1[%c0_9, %c0_10, %c0_11] : memref<2x2x32xf32, #tpu.memory_space<vmem>>, vector<1x2x32xf32>
    %10 = vector.shape_cast %9 : vector<1x2x32xf32> to vector<2x32xf32>
    %c0_i32 = arith.constant 0 : i32
    %11 = arith.index_cast %c0_i32 : i32 to index
    %c0_12 = arith.constant 0 : index
    %c0_13 = arith.constant 0 : index
    %12 = vector.load %arg11[%11, %c0_12, %c0_13] : memref<8x2x32xf32, #tpu.memory_space<vmem>>, vector<1x2x32xf32>
    %13 = vector.shape_cast %12 : vector<1x2x32xf32> to vector<2x32xf32>
    %c0_14 = arith.constant 0 : index
    %c0_15 = arith.constant 0 : index
    %14 = vector.load %arg3[%c0_14, %c0_15] : memref<32x32xf32, #tpu.memory_space<vmem>>, vector<32x32xf32>
    %cst_16 = arith.constant dense<0.000000e+00> : vector<2x32xf32>
    %15 = tpu.matmul %10, %14, %cst_16 {dimension_numbers = #tpu.dot_dimension_numbers<[1], [0], [0], [1], [0, 0, 1, 1], [], []>} : vector<2x32xf32>, vector<32x32xf32>, vector<2x32xf32> -> vector<2x32xf32>
    %16 = arith.addf %13, %15 : vector<2x32xf32>
    %17 = math.tanh %16 : vector<2x32xf32>
    %18 = arith.index_cast %c0_i32 : i32 to index
    %c0_17 = arith.constant 0 : index
    %c0_18 = arith.constant 0 : index
    %19 = vector.load %arg11[%18, %c0_17, %c0_18] : memref<8x2x32xf32, #tpu.memory_space<vmem>>, vector<1x2x32xf32>
    %20 = vector.shape_cast %19 : vector<1x2x32xf32> to vector<2x32xf32>
    %21 = vector.shape_cast %17 : vector<2x32xf32> to vector<1x2x32xf32>
    tpu.vector_store %arg11[%18, %c0_17, %c0_18], %21 {strides = array<i32>} : memref<8x2x32xf32, #tpu.memory_space<vmem>>, vector<1x2x32xf32>,
    %c1_i32 = arith.constant 1 : i32
    %22 = arith.index_cast %c1_i32 : i32 to index
    %c0_19 = arith.constant 0 : index
    %c0_20 = arith.constant 0 : index
    %23 = vector.load %arg11[%22, %c0_19, %c0_20] : memref<8x2x32xf32, #tpu.memory_space<vmem>>, vector<1x2x32xf32>
    %24 = vector.shape_cast %23 : vector<1x2x32xf32> to vector<2x32xf32>
    %c0_21 = arith.constant 0 : index
    %c0_22 = arith.constant 0 : index
    %25 = vector.load %arg3[%c0_21, %c0_22] : memref<32x32xf32, #tpu.memory_space<vmem>>, vector<32x32xf32>
    %cst_23 = arith.constant dense<0.000000e+00> : vector<2x32xf32>
    %26 = tpu.matmul %17, %25, %cst_23 {dimension_numbers = #tpu.dot_dimension_numbers<[1], [0], [0], [1], [0, 0, 1, 1], [], []>} : vector<2x32xf32>, vector<32x32xf32>, vector<2x32xf32> -> vector<2x32xf32>
    %27 = arith.addf %24, %26 : vector<2x32xf32>
    %28 = math.tanh %27 : vector<2x32xf32>
    %29 = arith.index_cast %c1_i32 : i32 to index
    %c0_24 = arith.constant 0 : index
    %c0_25 = arith.constant 0 : index
    %30 = vector.load %arg11[%29, %c0_24, %c0_25] : memref<8x2x32xf32, #tpu.memory_space<vmem>>, vector<1x2x32xf32>
    %31 = vector.shape_cast %30 : vector<1x2x32xf32> to vector<2x32xf32>
    %32 = vector.shape_cast %28 : vector<2x32xf32> to vector<1x2x32xf32>
    tpu.vector_store %arg11[%29, %c0_24, %c0_25], %32 {strides = array<i32>} : memref<8x2x32xf32, #tpu.memory_space<vmem>>, vector<1x2x32xf32>,
    %c2_i32 = arith.constant 2 : i32
    %33 = arith.index_cast %c2_i32 : i32 to index
    %c0_26 = arith.constant 0 : index
    %c0_27 = arith.constant 0 : index
    %34 = vector.load %arg11[%33, %c0_26, %c0_27] : memref<8x2x32xf32, #tpu.memory_space<vmem>>, vector<1x2x32xf32>
    %35 = vector.shape_cast %34 : vector<1x2x32xf32> to vector<2x32xf32>
    %c0_28 = arith.constant 0 : index
    %c0_29 = arith.constant 0 : index
    %36 = vector.load %arg3[%c0_28, %c0_29] : memref<32x32xf32, #tpu.memory_space<vmem>>, vector<32x32xf32>
    %cst_30 = arith.constant dense<0.000000e+00> : vector<2x32xf32>
    %37 = tpu.matmul %28, %36, %cst_30 {dimension_numbers = #tpu.dot_dimension_numbers<[1], [0], [0], [1], [0, 0, 1, 1], [], []>} : vector<2x32xf32>, vector<32x32xf32>, vector<2x32xf32> -> vector<2x32xf32>
    %38 = arith.addf %35, %37 : vector<2x32xf32>
    %39 = math.tanh %38 : vector<2x32xf32>
    %40 = arith.index_cast %c2_i32 : i32 to index
    %c0_31 = arith.constant 0 : index
    %c0_32 = arith.constant 0 : index
    %41 = vector.load %arg11[%40, %c0_31, %c0_32] : memref<8x2x32xf32, #tpu.memory_space<vmem>>, vector<1x2x32xf32>
    %42 = vector.shape_cast %41 : vector<1x2x32xf32> to vector<2x32xf32>
    %43 = vector.shape_cast %39 : vector<2x32xf32> to vector<1x2x32xf32>
    tpu.vector_store %arg11[%40, %c0_31, %c0_32], %43 {strides = array<i32>} : memref<8x2x32xf32, #tpu.memory_space<vmem>>, vector<1x2x32xf32>,
    %c3_i32 = arith.constant 3 : i32
    %44 = arith.index_cast %c3_i32 : i32 to index
    %c0_33 = arith.constant 0 : index
    %c0_34 = arith.constant 0 : index
    %45 = vector.load %arg11[%44, %c0_33, %c0_34] : memref<8x2x32xf32, #tpu.memory_space<vmem>>, vector<1x2x32xf32>
    %46 = vector.shape_cast %45 : vector<1x2x32xf32> to vector<2x32xf32>
    %c0_35 = arith.constant 0 : index
    %c0_36 = arith.constant 0 : index
    %47 = vector.load %arg3[%c0_35, %c0_36] : memref<32x32xf32, #tpu.memory_space<vmem>>, vector<32x32xf32>
    %cst_37 = arith.constant dense<0.000000e+00> : vector<2x32xf32>
    %48 = tpu.matmul %39, %47, %cst_37 {dimension_numbers = #tpu.dot_dimension_numbers<[1], [0], [0], [1], [0, 0, 1, 1], [], []>} : vector<2x32xf32>, vector<32x32xf32>, vector<2x32xf32> -> vector<2x32xf32>
    %49 = arith.addf %46, %48 : vector<2x32xf32>
    %50 = math.tanh %49 : vector<2x32xf32>
    %51 = arith.index_cast %c3_i32 : i32 to index
    %c0_38 = arith.constant 0 : index
    %c0_39 = arith.constant 0 : index
    %52 = vector.load %arg11[%51, %c0_38, %c0_39] : memref<8x2x32xf32, #tpu.memory_space<vmem>>, vector<1x2x32xf32>
    %53 = vector.shape_cast %52 : vector<1x2x32xf32> to vector<2x32xf32>
    %54 = vector.shape_cast %50 : vector<2x32xf32> to vector<1x2x32xf32>
    tpu.vector_store %arg11[%51, %c0_38, %c0_39], %54 {strides = array<i32>} : memref<8x2x32xf32, #tpu.memory_space<vmem>>, vector<1x2x32xf32>,
    %c4_i32 = arith.constant 4 : i32
    %55 = arith.index_cast %c4_i32 : i32 to index
    %c0_40 = arith.constant 0 : index
    %c0_41 = arith.constant 0 : index
    %56 = vector.load %arg11[%55, %c0_40, %c0_41] : memref<8x2x32xf32, #tpu.memory_space<vmem>>, vector<1x2x32xf32>
    %57 = vector.shape_cast %56 : vector<1x2x32xf32> to vector<2x32xf32>
    %c0_42 = arith.constant 0 : index
    %c0_43 = arith.constant 0 : index
    %58 = vector.load %arg3[%c0_42, %c0_43] : memref<32x32xf32, #tpu.memory_space<vmem>>, vector<32x32xf32>
    %cst_44 = arith.constant dense<0.000000e+00> : vector<2x32xf32>
    %59 = tpu.matmul %50, %58, %cst_44 {dimension_numbers = #tpu.dot_dimension_numbers<[1], [0], [0], [1], [0, 0, 1, 1], [], []>} : vector<2x32xf32>, vector<32x32xf32>, vector<2x32xf32> -> vector<2x32xf32>
    %60 = arith.addf %57, %59 : vector<2x32xf32>
    %61 = math.tanh %60 : vector<2x32xf32>
    %62 = arith.index_cast %c4_i32 : i32 to index
    %c0_45 = arith.constant 0 : index
    %c0_46 = arith.constant 0 : index
    %63 = vector.load %arg11[%62, %c0_45, %c0_46] : memref<8x2x32xf32, #tpu.memory_space<vmem>>, vector<1x2x32xf32>
    %64 = vector.shape_cast %63 : vector<1x2x32xf32> to vector<2x32xf32>
    %65 = vector.shape_cast %61 : vector<2x32xf32> to vector<1x2x32xf32>
    tpu.vector_store %arg11[%62, %c0_45, %c0_46], %65 {strides = array<i32>} : memref<8x2x32xf32, #tpu.memory_space<vmem>>, vector<1x2x32xf32>,
    %c5_i32 = arith.constant 5 : i32
    %66 = arith.index_cast %c5_i32 : i32 to index
    %c0_47 = arith.constant 0 : index
    %c0_48 = arith.constant 0 : index
    %67 = vector.load %arg11[%66, %c0_47, %c0_48] : memref<8x2x32xf32, #tpu.memory_space<vmem>>, vector<1x2x32xf32>
    %68 = vector.shape_cast %67 : vector<1x2x32xf32> to vector<2x32xf32>
    %c0_49 = arith.constant 0 : index
    %c0_50 = arith.constant 0 : index
    %69 = vector.load %arg3[%c0_49, %c0_50] : memref<32x32xf32, #tpu.memory_space<vmem>>, vector<32x32xf32>
    %cst_51 = arith.constant dense<0.000000e+00> : vector<2x32xf32>
    %70 = tpu.matmul %61, %69, %cst_51 {dimension_numbers = #tpu.dot_dimension_numbers<[1], [0], [0], [1], [0, 0, 1, 1], [], []>} : vector<2x32xf32>, vector<32x32xf32>, vector<2x32xf32> -> vector<2x32xf32>
    %71 = arith.addf %68, %70 : vector<2x32xf32>
    %72 = math.tanh %71 : vector<2x32xf32>
    %73 = arith.index_cast %c5_i32 : i32 to index
    %c0_52 = arith.constant 0 : index
    %c0_53 = arith.constant 0 : index
    %74 = vector.load %arg11[%73, %c0_52, %c0_53] : memref<8x2x32xf32, #tpu.memory_space<vmem>>, vector<1x2x32xf32>
    %75 = vector.shape_cast %74 : vector<1x2x32xf32> to vector<2x32xf32>
    %76 = vector.shape_cast %72 : vector<2x32xf32> to vector<1x2x32xf32>
    tpu.vector_store %arg11[%73, %c0_52, %c0_53], %76 {strides = array<i32>} : memref<8x2x32xf32, #tpu.memory_space<vmem>>, vector<1x2x32xf32>,
    %c6_i32 = arith.constant 6 : i32
    %77 = arith.index_cast %c6_i32 : i32 to index
    %c0_54 = arith.constant 0 : index
    %c0_55 = arith.constant 0 : index
    %78 = vector.load %arg11[%77, %c0_54, %c0_55] : memref<8x2x32xf32, #tpu.memory_space<vmem>>, vector<1x2x32xf32>
    %79 = vector.shape_cast %78 : vector<1x2x32xf32> to vector<2x32xf32>
    %c0_56 = arith.constant 0 : index
    %c0_57 = arith.constant 0 : index
    %80 = vector.load %arg3[%c0_56, %c0_57] : memref<32x32xf32, #tpu.memory_space<vmem>>, vector<32x32xf32>
    %cst_58 = arith.constant dense<0.000000e+00> : vector<2x32xf32>
    %81 = tpu.matmul %72, %80, %cst_58 {dimension_numbers = #tpu.dot_dimension_numbers<[1], [0], [0], [1], [0, 0, 1, 1], [], []>} : vector<2x32xf32>, vector<32x32xf32>, vector<2x32xf32> -> vector<2x32xf32>
    %82 = arith.addf %79, %81 : vector<2x32xf32>
    %83 = math.tanh %82 : vector<2x32xf32>
    %84 = arith.index_cast %c6_i32 : i32 to index
    %c0_59 = arith.constant 0 : index
    %c0_60 = arith.constant 0 : index
    %85 = vector.load %arg11[%84, %c0_59, %c0_60] : memref<8x2x32xf32, #tpu.memory_space<vmem>>, vector<1x2x32xf32>
    %86 = vector.shape_cast %85 : vector<1x2x32xf32> to vector<2x32xf32>
    %87 = vector.shape_cast %83 : vector<2x32xf32> to vector<1x2x32xf32>
    tpu.vector_store %arg11[%84, %c0_59, %c0_60], %87 {strides = array<i32>} : memref<8x2x32xf32, #tpu.memory_space<vmem>>, vector<1x2x32xf32>,
    %c7_i32 = arith.constant 7 : i32
    %88 = arith.index_cast %c7_i32 : i32 to index
    %c0_61 = arith.constant 0 : index
    %c0_62 = arith.constant 0 : index
    %89 = vector.load %arg11[%88, %c0_61, %c0_62] : memref<8x2x32xf32, #tpu.memory_space<vmem>>, vector<1x2x32xf32>
    %90 = vector.shape_cast %89 : vector<1x2x32xf32> to vector<2x32xf32>
    %c0_63 = arith.constant 0 : index
    %c0_64 = arith.constant 0 : index
    %91 = vector.load %arg3[%c0_63, %c0_64] : memref<32x32xf32, #tpu.memory_space<vmem>>, vector<32x32xf32>
    %cst_65 = arith.constant dense<0.000000e+00> : vector<2x32xf32>
    %92 = tpu.matmul %83, %91, %cst_65 {dimension_numbers = #tpu.dot_dimension_numbers<[1], [0], [0], [1], [0, 0, 1, 1], [], []>} : vector<2x32xf32>, vector<32x32xf32>, vector<2x32xf32> -> vector<2x32xf32>
    %93 = arith.addf %90, %92 : vector<2x32xf32>
    %94 = math.tanh %93 : vector<2x32xf32>
    %95 = arith.index_cast %c7_i32 : i32 to index
    %c0_66 = arith.constant 0 : index
    %c0_67 = arith.constant 0 : index
    %96 = vector.load %arg11[%95, %c0_66, %c0_67] : memref<8x2x32xf32, #tpu.memory_space<vmem>>, vector<1x2x32xf32>
    %97 = vector.shape_cast %96 : vector<1x2x32xf32> to vector<2x32xf32>
    %98 = vector.shape_cast %94 : vector<2x32xf32> to vector<1x2x32xf32>
    tpu.vector_store %arg11[%95, %c0_66, %c0_67], %98 {strides = array<i32>} : memref<8x2x32xf32, #tpu.memory_space<vmem>>, vector<1x2x32xf32>,
    %c8_i32 = arith.constant 8 : i32
    %c0_68 = arith.constant 0 : index
    %c0_69 = arith.constant 0 : index
    %c0_70 = arith.constant 0 : index
    %99 = vector.load %arg11[%c0_68, %c0_69, %c0_70] : memref<8x2x32xf32, #tpu.memory_space<vmem>>, vector<8x2x32xf32>
    %100 = vector.shape_cast %99 : vector<8x2x32xf32> to vector<16x32xf32>
    %c0_71 = arith.constant 0 : index
    %c0_72 = arith.constant 0 : index
    %101 = vector.load %arg5[%c0_71, %c0_72] : memref<32x32xf32, #tpu.memory_space<vmem>>, vector<32x32xf32>
    %cst_73 = arith.constant dense<0.000000e+00> : vector<16x32xf32>
    %102 = tpu.matmul %100, %101, %cst_73 {dimension_numbers = #tpu.dot_dimension_numbers<[1], [0], [0], [1], [0, 0, 1, 1], [], []>} : vector<16x32xf32>, vector<32x32xf32>, vector<16x32xf32> -> vector<16x32xf32>
    %c0_74 = arith.constant 0 : index
    %c0_75 = arith.constant 0 : index
    %103 = vector.load %arg7[%c0_74, %c0_75] : memref<1x32xf32, #tpu.memory_space<vmem>>, vector<1x32xf32>
    %104 = vector.broadcast %103 : vector<1x32xf32> to vector<16x32xf32>
    %105 = arith.addf %102, %104 : vector<16x32xf32>
    %106 = vector.shape_cast %105 : vector<16x32xf32> to vector<8x2x32xf32>
    %c0_76 = arith.constant 0 : index
    %c0_77 = arith.constant 0 : index
    %c0_78 = arith.constant 0 : index
    %107 = vector.load %arg11[%c0_76, %c0_77, %c0_78] : memref<8x2x32xf32, #tpu.memory_space<vmem>>, vector<8x2x32xf32>
    tpu.vector_store %arg11[%c0_76, %c0_77, %c0_78], %106 {strides = array<i32>} : memref<8x2x32xf32, #tpu.memory_space<vmem>>, vector<8x2x32xf32>,
    %c1 = arith.constant 1 : index
    %c0_79 = arith.constant 0 : index
    %c0_80 = arith.constant 0 : index
    %108 = vector.load %arg1[%c1, %c0_79, %c0_80] : memref<2x2x32xf32, #tpu.memory_space<vmem>>, vector<1x2x32xf32>
    %109 = vector.shape_cast %108 : vector<1x2x32xf32> to vector<2x32xf32>
    %c0_i32_81 = arith.constant 0 : i32
    %110 = arith.index_cast %c0_i32_81 : i32 to index
    %c0_82 = arith.constant 0 : index
    %c0_83 = arith.constant 0 : index
    %111 = vector.load %arg11[%110, %c0_82, %c0_83] : memref<8x2x32xf32, #tpu.memory_space<vmem>>, vector<1x2x32xf32>
    %112 = vector.shape_cast %111 : vector<1x2x32xf32> to vector<2x32xf32>
    %c0_84 = arith.constant 0 : index
    %c0_85 = arith.constant 0 : index
    %113 = vector.load %arg6[%c0_84, %c0_85] : memref<32x32xf32, #tpu.memory_space<vmem>>, vector<32x32xf32>
    %cst_86 = arith.constant dense<0.000000e+00> : vector<2x32xf32>
    %114 = tpu.matmul %109, %113, %cst_86 {dimension_numbers = #tpu.dot_dimension_numbers<[1], [0], [0], [1], [0, 0, 1, 1], [], []>} : vector<2x32xf32>, vector<32x32xf32>, vector<2x32xf32> -> vector<2x32xf32>
    %115 = arith.addf %112, %114 : vector<2x32xf32>
    %116 = math.tanh %115 : vector<2x32xf32>
    %c1_i32_87 = arith.constant 1 : i32
    %117 = arith.index_cast %c1_i32_87 : i32 to index
    %c0_88 = arith.constant 0 : index
    %c0_89 = arith.constant 0 : index
    %118 = vector.load %arg11[%117, %c0_88, %c0_89] : memref<8x2x32xf32, #tpu.memory_space<vmem>>, vector<1x2x32xf32>
    %119 = vector.shape_cast %118 : vector<1x2x32xf32> to vector<2x32xf32>
    %c0_90 = arith.constant 0 : index
    %c0_91 = arith.constant 0 : index
    %120 = vector.load %arg6[%c0_90, %c0_91] : memref<32x32xf32, #tpu.memory_space<vmem>>, vector<32x32xf32>
    %cst_92 = arith.constant dense<0.000000e+00> : vector<2x32xf32>
    %121 = tpu.matmul %116, %120, %cst_92 {dimension_numbers = #tpu.dot_dimension_numbers<[1], [0], [0], [1], [0, 0, 1, 1], [], []>} : vector<2x32xf32>, vector<32x32xf32>, vector<2x32xf32> -> vector<2x32xf32>
    %122 = arith.addf %119, %121 : vector<2x32xf32>
    %123 = math.tanh %122 : vector<2x32xf32>
    %c2_i32_93 = arith.constant 2 : i32
    %124 = arith.index_cast %c2_i32_93 : i32 to index
    %c0_94 = arith.constant 0 : index
    %c0_95 = arith.constant 0 : index
    %125 = vector.load %arg11[%124, %c0_94, %c0_95] : memref<8x2x32xf32, #tpu.memory_space<vmem>>, vector<1x2x32xf32>
    %126 = vector.shape_cast %125 : vector<1x2x32xf32> to vector<2x32xf32>
    %c0_96 = arith.constant 0 : index
    %c0_97 = arith.constant 0 : index
    %127 = vector.load %arg6[%c0_96, %c0_97] : memref<32x32xf32, #tpu.memory_space<vmem>>, vector<32x32xf32>
    %cst_98 = arith.constant dense<0.000000e+00> : vector<2x32xf32>
    %128 = tpu.matmul %123, %127, %cst_98 {dimension_numbers = #tpu.dot_dimension_numbers<[1], [0], [0], [1], [0, 0, 1, 1], [], []>} : vector<2x32xf32>, vector<32x32xf32>, vector<2x32xf32> -> vector<2x32xf32>
    %129 = arith.addf %126, %128 : vector<2x32xf32>
    %130 = math.tanh %129 : vector<2x32xf32>
    %c3_i32_99 = arith.constant 3 : i32
    %131 = arith.index_cast %c3_i32_99 : i32 to index
    %c0_100 = arith.constant 0 : index
    %c0_101 = arith.constant 0 : index
    %132 = vector.load %arg11[%131, %c0_100, %c0_101] : memref<8x2x32xf32, #tpu.memory_space<vmem>>, vector<1x2x32xf32>
    %133 = vector.shape_cast %132 : vector<1x2x32xf32> to vector<2x32xf32>
    %c0_102 = arith.constant 0 : index
    %c0_103 = arith.constant 0 : index
    %134 = vector.load %arg6[%c0_102, %c0_103] : memref<32x32xf32, #tpu.memory_space<vmem>>, vector<32x32xf32>
    %cst_104 = arith.constant dense<0.000000e+00> : vector<2x32xf32>
    %135 = tpu.matmul %130, %134, %cst_104 {dimension_numbers = #tpu.dot_dimension_numbers<[1], [0], [0], [1], [0, 0, 1, 1], [], []>} : vector<2x32xf32>, vector<32x32xf32>, vector<2x32xf32> -> vector<2x32xf32>
    %136 = arith.addf %133, %135 : vector<2x32xf32>
    %137 = math.tanh %136 : vector<2x32xf32>
    %c4_i32_105 = arith.constant 4 : i32
    %138 = arith.index_cast %c4_i32_105 : i32 to index
    %c0_106 = arith.constant 0 : index
    %c0_107 = arith.constant 0 : index
    %139 = vector.load %arg11[%138, %c0_106, %c0_107] : memref<8x2x32xf32, #tpu.memory_space<vmem>>, vector<1x2x32xf32>
    %140 = vector.shape_cast %139 : vector<1x2x32xf32> to vector<2x32xf32>
    %c0_108 = arith.constant 0 : index
    %c0_109 = arith.constant 0 : index
    %141 = vector.load %arg6[%c0_108, %c0_109] : memref<32x32xf32, #tpu.memory_space<vmem>>, vector<32x32xf32>
    %cst_110 = arith.constant dense<0.000000e+00> : vector<2x32xf32>
    %142 = tpu.matmul %137, %141, %cst_110 {dimension_numbers = #tpu.dot_dimension_numbers<[1], [0], [0], [1], [0, 0, 1, 1], [], []>} : vector<2x32xf32>, vector<32x32xf32>, vector<2x32xf32> -> vector<2x32xf32>
    %143 = arith.addf %140, %142 : vector<2x32xf32>
    %144 = math.tanh %143 : vector<2x32xf32>
    %c5_i32_111 = arith.constant 5 : i32
    %145 = arith.index_cast %c5_i32_111 : i32 to index
    %c0_112 = arith.constant 0 : index
    %c0_113 = arith.constant 0 : index
    %146 = vector.load %arg11[%145, %c0_112, %c0_113] : memref<8x2x32xf32, #tpu.memory_space<vmem>>, vector<1x2x32xf32>
    %147 = vector.shape_cast %146 : vector<1x2x32xf32> to vector<2x32xf32>
    %c0_114 = arith.constant 0 : index
    %c0_115 = arith.constant 0 : index
    %148 = vector.load %arg6[%c0_114, %c0_115] : memref<32x32xf32, #tpu.memory_space<vmem>>, vector<32x32xf32>
    %cst_116 = arith.constant dense<0.000000e+00> : vector<2x32xf32>
    %149 = tpu.matmul %144, %148, %cst_116 {dimension_numbers = #tpu.dot_dimension_numbers<[1], [0], [0], [1], [0, 0, 1, 1], [], []>} : vector<2x32xf32>, vector<32x32xf32>, vector<2x32xf32> -> vector<2x32xf32>
    %150 = arith.addf %147, %149 : vector<2x32xf32>
    %151 = math.tanh %150 : vector<2x32xf32>
    %c6_i32_117 = arith.constant 6 : i32
    %152 = arith.index_cast %c6_i32_117 : i32 to index
    %c0_118 = arith.constant 0 : index
    %c0_119 = arith.constant 0 : index
    %153 = vector.load %arg11[%152, %c0_118, %c0_119] : memref<8x2x32xf32, #tpu.memory_space<vmem>>, vector<1x2x32xf32>
    %154 = vector.shape_cast %153 : vector<1x2x32xf32> to vector<2x32xf32>
    %c0_120 = arith.constant 0 : index
    %c0_121 = arith.constant 0 : index
    %155 = vector.load %arg6[%c0_120, %c0_121] : memref<32x32xf32, #tpu.memory_space<vmem>>, vector<32x32xf32>
    %cst_122 = arith.constant dense<0.000000e+00> : vector<2x32xf32>
    %156 = tpu.matmul %151, %155, %cst_122 {dimension_numbers = #tpu.dot_dimension_numbers<[1], [0], [0], [1], [0, 0, 1, 1], [], []>} : vector<2x32xf32>, vector<32x32xf32>, vector<2x32xf32> -> vector<2x32xf32>
    %157 = arith.addf %154, %156 : vector<2x32xf32>
    %158 = math.tanh %157 : vector<2x32xf32>
    %c7_i32_123 = arith.constant 7 : i32
    %159 = arith.index_cast %c7_i32_123 : i32 to index
    %c0_124 = arith.constant 0 : index
    %c0_125 = arith.constant 0 : index
    %160 = vector.load %arg11[%159, %c0_124, %c0_125] : memref<8x2x32xf32, #tpu.memory_space<vmem>>, vector<1x2x32xf32>
    %161 = vector.shape_cast %160 : vector<1x2x32xf32> to vector<2x32xf32>
    %c0_126 = arith.constant 0 : index
    %c0_127 = arith.constant 0 : index
    %162 = vector.load %arg6[%c0_126, %c0_127] : memref<32x32xf32, #tpu.memory_space<vmem>>, vector<32x32xf32>
    %cst_128 = arith.constant dense<0.000000e+00> : vector<2x32xf32>
    %163 = tpu.matmul %158, %162, %cst_128 {dimension_numbers = #tpu.dot_dimension_numbers<[1], [0], [0], [1], [0, 0, 1, 1], [], []>} : vector<2x32xf32>, vector<32x32xf32>, vector<2x32xf32> -> vector<2x32xf32>
    %164 = arith.addf %161, %163 : vector<2x32xf32>
    %165 = math.tanh %164 : vector<2x32xf32>
    %c8_i32_129 = arith.constant 8 : i32
    %c0_130 = arith.constant 0 : index
    %c0_131 = arith.constant 0 : index
    %166 = vector.load %arg8[%c0_130, %c0_131] : memref<32x8xf32, #tpu.memory_space<vmem>>, vector<32x8xf32>
    %cst_132 = arith.constant dense<0.000000e+00> : vector<2x8xf32>
    %167 = tpu.matmul %165, %166, %cst_132 {dimension_numbers = #tpu.dot_dimension_numbers<[1], [0], [0], [1], [0, 0, 1, 1], [], []>} : vector<2x32xf32>, vector<32x8xf32>, vector<2x8xf32> -> vector<2x8xf32>
    %c0_133 = arith.constant 0 : index
    %c0_134 = arith.constant 0 : index
    %168 = vector.load %arg9[%c0_133, %c0_134] : memref<1x8xf32, #tpu.memory_space<vmem>>, vector<1x8xf32>
    %169 = vector.broadcast %168 : vector<1x8xf32> to vector<2x8xf32>
    %170 = arith.addf %167, %169 : vector<2x8xf32>
    %c0_135 = arith.constant 0 : index
    %c0_136 = arith.constant 0 : index
    %171 = vector.load %arg10[%c0_135, %c0_136] : memref<2x8xf32, #tpu.memory_space<vmem>>, vector<2x8xf32>
    tpu.vector_store %arg10[%c0_135, %c0_136], %170 {strides = array<i32>} : memref<2x8xf32, #tpu.memory_space<vmem>>, vector<2x8xf32>,
    return
  }
}

</mosaic_0001>

<llo_original>
// kernel: _rnn_forward.1
$region0: #{_rnn_forward.1}
  #allocation0 [shape = 'u32[]', space=smem, size = 0x4, offset = 0x4, fixed_abs, tag = 'smem constant byte address 0x4 - core index']
  #allocation1 [shape = 'u32[144,128]{1,0:T(1,128)}', space=vmem, size = 0x12000, scoped, tag = 'internal scratch']
  #allocation2 [shape = 'f32[8,2,32]{2,1,0:T(2,128)}', space=vmem, size = 0x2000, scoped, tag = 'scratch operand']
  %s0 = inlined_call_operand.vmem [shape: f32[8,2,16], index: 0, kind: input, shape index: {}]
  %s1 = inlined_call_operand.vmem [shape: f32[2,2,32], index: 1, kind: input, shape index: {}]
  %s2 = inlined_call_operand.vmem [shape: f32[16,32], index: 2, kind: input, shape index: {}]
  %s3 = inlined_call_operand.vmem [shape: f32[32,32], index: 3, kind: input, shape index: {}]
  %s4 = inlined_call_operand.vmem [shape: f32[1,32], index: 4, kind: input, shape index: {}]
  %s5 = inlined_call_operand.vmem [shape: f32[32,32], index: 5, kind: input, shape index: {}]
  %s6 = inlined_call_operand.vmem [shape: f32[32,32], index: 6, kind: input, shape index: {}]
  %s7 = inlined_call_operand.vmem [shape: f32[1,32], index: 7, kind: input, shape index: {}]
  %s8 = inlined_call_operand.vmem [shape: f32[32,8], index: 8, kind: input, shape index: {}]
  %s9 = inlined_call_operand.vmem [shape: f32[1,8], index: 9, kind: input, shape index: {}]
  %s10 = inlined_call_operand.hbm [shape: f32[2,8], index: 10, kind: output, shape index: {}]
  %s11 = sld [smem:[#allocation0]]
  $region50: #{_rnn_forward.1} parent=0
    _
  %s13 = ssub.s32 1, %s11
  %s14 = scalar_select 0, %s13, %s11
  $region1: #{_rnn_forward.1} parent=0
    #allocation3 [shape = 'u8[1024]{0}', space=vmem, size = 0x400, scoped, tag = 'output window, operand 0, single buffered']
    #allocation4 [shape = 's32[1]{0}', space=sflag, size = 0x4, scoped, tag = 'scoped memory for _rnn_forward.1']
    %15 = vsyncpa [#allocation4], 0
    // Predicated region
    $region2: #{_rnn_forward.1} parent=1 // pred_check
      _
    $region3: #{_rnn_forward.1} parent=1 // pred_check_branch
      %17 = sbr.rel (0) target = $region5
    $region4: #{_rnn_forward.1} parent=1 // pred_region
      _
    $region5: #{_rnn_forward.1} parent=1 // pred_fallthru
      _
    // Predicated region
    $region6: #{_rnn_forward.1} parent=1 // pred_check
      _
    $region7: #{_rnn_forward.1} parent=1 // pred_check_branch
      %19 = sbr.rel (0) target = $region9
    $region8: #{_rnn_forward.1} parent=1 // pred_region
      _
    $region9: #{_rnn_forward.1} parent=1 // pred_fallthru
      _
    // Predicated region
    $region10: #{_rnn_forward.1} parent=1 // pred_check
      _
    $region11: #{_rnn_forward.1} parent=1 // pred_check_branch
      %21 = sbr.rel (0) target = $region13
    $region12: #{_rnn_forward.1} parent=1 // pred_region
      _
    $region13: #{_rnn_forward.1} parent=1 // pred_fallthru
      _
    // Predicated region
    $region14: #{_rnn_forward.1} parent=1 // pred_check
      _
    $region15: #{_rnn_forward.1} parent=1 // pred_check_branch
      %23 = sbr.rel (0) target = $region17
    $region16: #{_rnn_forward.1} parent=1 // pred_region
      _
    $region17: #{_rnn_forward.1} parent=1 // pred_fallthru
      _
    // Predicated region
    $region18: #{_rnn_forward.1} parent=1 // pred_check
      _
    $region19: #{_rnn_forward.1} parent=1 // pred_check_branch
      %25 = sbr.rel (0) target = $region21
    $region20: #{_rnn_forward.1} parent=1 // pred_region
      _
    $region21: #{_rnn_forward.1} parent=1 // pred_fallthru
      _
    // Predicated region
    $region22: #{_rnn_forward.1} parent=1 // pred_check
      _
    $region23: #{_rnn_forward.1} parent=1 // pred_check_branch
      %27 = sbr.rel (0) target = $region25
    $region24: #{_rnn_forward.1} parent=1 // pred_region
      _
    $region25: #{_rnn_forward.1} parent=1 // pred_fallthru
      _
    // Predicated region
    $region26: #{_rnn_forward.1} parent=1 // pred_check
      _
    $region27: #{_rnn_forward.1} parent=1 // pred_check_branch
      %29 = sbr.rel (0) target = $region29
    $region28: #{_rnn_forward.1} parent=1 // pred_region
      _
    $region29: #{_rnn_forward.1} parent=1 // pred_fallthru
      _
    // Predicated region
    $region30: #{_rnn_forward.1} parent=1 // pred_check
      _
    $region31: #{_rnn_forward.1} parent=1 // pred_check_branch
      %31 = sbr.rel (0) target = $region33
    $region32: #{_rnn_forward.1} parent=1 // pred_region
      _
    $region33: #{_rnn_forward.1} parent=1 // pred_fallthru
      _
    // Predicated region
    $region34: #{_rnn_forward.1} parent=1 // pred_check
      _
    $region35: #{_rnn_forward.1} parent=1 // pred_check_branch
      %33 = sbr.rel (0) target = $region37
    $region36: #{_rnn_forward.1} parent=1 // pred_region
      _
    $region37: #{_rnn_forward.1} parent=1 // pred_fallthru
      _
    // Predicated region
    $region38: #{_rnn_forward.1} parent=1 // pred_check
      _
    $region39: #{_rnn_forward.1} parent=1 // pred_check_branch
      %35 = sbr.rel (0) target = $region41
    $region40: #{_rnn_forward.1} parent=1 // pred_region
      _
    $region41: #{_rnn_forward.1} parent=1 // pred_fallthru
      _
    %v36 = vld [vmem:[%s0] sm:$0x3]
    %v37 = vld [vmem:[%s0 + $0x2] sm:$0x3]
    %v38 = vld [vmem:[%s0 + $0x4] sm:$0x3]
    %v39 = vld [vmem:[%s0 + $0x6] sm:$0x3]
    %v40 = vld [vmem:[%s0 + $0x8] sm:$0x3]
    %v41 = vld [vmem:[%s0 + $0xa] sm:$0x3]
    %v42 = vld [vmem:[%s0 + $0xc] sm:$0x3]
    %v43 = vld [vmem:[%s0 + $0xe] sm:$0x3]
    %v44 = vld [vmem:[%s2] sm:$0xff]
    %v45 = vld [vmem:[%s2 + $0x8] sm:$0xff]
    %v46 = vld [vmem:[%s4] sm:$0x1]
    %v48 = vlaneseq
    %v49 = vshrl.u32 %v48, 7
    %v50 = vsub.s32 0, %v49
    %v51 = vrot.slane %v46, %v50
    %v61 = vcombine.low %v36, %v37
    %v62 = vcombine.low %v38, %v39
    %v64 = vunpack.c.l.s4 1983009808
    %v65 = vunpack.c.0.s8 %v64
    %v66 = vlaneseq
    %v67 = vshrl.u32 %v66, 7
    %v68 = vsub.s32 %v65, %v67
    %v69 = vrot.slane %v61, %v68
    %v71 = vunpack.c.l.s4 1983009808
    %v72 = vunpack.c.0.s8 %v71
    %v73 = vlaneseq
    %v74 = vshrl.u32 %v73, 7
    %v75 = vsub.s32 %v72, %v74
    %v76 = vrot.slane %v62, %v75
    %v77 = vcombine.low %v69, %v76
    %v78 = vcombine.low %v40, %v41
    %v79 = vcombine.low %v42, %v43
    %v81 = vunpack.c.l.s4 1983009808
    %v82 = vunpack.c.0.s8 %v81
    %v83 = vlaneseq
    %v84 = vshrl.u32 %v83, 7
    %v85 = vsub.s32 %v82, %v84
    %v86 = vrot.slane %v78, %v85
    %v88 = vunpack.c.l.s4 1983009808
    %v89 = vunpack.c.0.s8 %v88
    %v90 = vlaneseq
    %v91 = vshrl.u32 %v90, 7
    %v92 = vsub.s32 %v89, %v91
    %v93 = vrot.slane %v79, %v92
    %v94 = vcombine.low %v86, %v93
    %vm95 = vcmask 130048
    %v96 = vsel %vm95, %v77, 0
    %v98 = vsel %vm95, %v94, 0
    %100 = vmatprep.subr.mxu0 0.0
    %101 = vmatpush1.msra.mxu0 0.0
    %102 = vmatprep.subr.mxu0 0.0
    %103 = vmatpush1.msra.mxu0 0.0
    %104 = vmatprep.subr.mxu0 0.0
    %105 = vmatpush1.msra.mxu0 0.0
    %106 = vmatprep.subr.mxu0 0.0
    %107 = vmatpush1.msra.mxu0 0.0
    %108 = vmatprep.subr.mxu0 0.0
    %109 = vmatpush1.msra.mxu0 0.0
    %110 = vmatprep.subr.mxu0 0.0
    %111 = vmatpush1.msra.mxu0 0.0
    %112 = vmatprep.subr.mxu0 0.0
    %113 = vmatpush1.msra.mxu0 0.0
    %114 = vmatprep.subr.mxu0 0.0
    %115 = vmatpush1.msra.mxu0 0.0
    %116 = vmatprep.subr.mxu0 0.0
    %117 = vmatpush1.msra.mxu0 0.0
    %118 = vmatprep.subr.mxu0 0.0
    %119 = vmatpush1.msra.mxu0 0.0
    %120 = vmatprep.subr.mxu0 0.0
    %121 = vmatpush1.msra.mxu0 0.0
    %122 = vmatprep.subr.mxu0 0.0
    %123 = vmatpush1.msra.mxu0 0.0
    %124 = vmatprep.subr.mxu0 0.0
    %125 = vmatpush1.msra.mxu0 0.0
    %126 = vmatprep.subr.mxu0 0.0
    %127 = vmatpush1.msra.mxu0 0.0
    %128 = vmatprep.subr.mxu0 0.0
    %129 = vmatpush1.msra.mxu0 %v45
    %130 = vmatprep.subr.mxu0 0.0
    %131 = vmatpush1.msra.mxu0 %v44
    %132 = vmatprep.subr.mxu0 0.0
    %133 = vmatpush2.msra.mxu0 0.0
    %134 = vmatprep.subr.mxu0 0.0
    %135 = vmatpush2.msra.mxu0 0.0
    %136 = vmatprep.subr.mxu0 0.0
    %137 = vmatpush2.msra.mxu0 0.0
    %138 = vmatprep.subr.mxu0 0.0
    %139 = vmatpush2.msra.mxu0 0.0
    %140 = vmatprep.subr.mxu0 0.0
    %141 = vmatpush2.msra.mxu0 0.0
    %142 = vmatprep.subr.mxu0 0.0
    %143 = vmatpush2.msra.mxu0 0.0
    %144 = vmatprep.subr.mxu0 0.0
    %145 = vmatpush2.msra.mxu0 0.0
    %146 = vmatprep.subr.mxu0 0.0
    %147 = vmatpush2.msra.mxu0 0.0
    %148 = vmatprep.subr.mxu0 0.0
    %149 = vmatpush2.msra.mxu0 0.0
    %150 = vmatprep.subr.mxu0 0.0
    %151 = vmatpush2.msra.mxu0 0.0
    %152 = vmatprep.subr.mxu0 0.0
    %153 = vmatpush2.msra.mxu0 0.0
    %154 = vmatprep.subr.mxu0 0.0
    %155 = vmatpush2.msra.mxu0 0.0
    %156 = vmatprep.subr.mxu0 0.0
    %157 = vmatpush2.msra.mxu0 0.0
    %158 = vmatprep.subr.mxu0 0.0
    %159 = vmatpush2.msra.mxu0 0.0
    %160 = vmatprep.subr.mxu0 0.0
    %161 = vmatpush2.msra.mxu0 0.0
    %162 = vmatprep.subr.mxu0 0.0
    %163 = vmatpush2.msra.mxu0 0.0
    %164 = vmatprep.mubr.f32.mxu0 0.0
    %165 = vmatmul.mubr.f32.gmra.mxu0 %v96
    %v166 = vpop.f32.mrf.mxu0
    %v167 = vadd.f32 %v51, %v166
    %v168 = vpop.f32.mrf.mxu0
    %169 = vmatprep.mubr.f32.mxu0 0.0
    %170 = vmatmul.mubr.f32.gmra.mxu0 %v98
    %v171 = vpop.f32.mrf.mxu0
    %v172 = vadd.f32 %v51, %v171
    %v173 = vpop.f32.mrf.mxu0
    %174 = vdwg.mxu0
    %v177 = vcombine.high %v167, %v167
    %v179 = vunpack.c.l.s4 1983009808
    %v180 = vunpack.c.0.s8 %v179
    %v181 = vlaneseq
    %v182 = vshrl.u32 %v181, 7
    %v183 = vsub.s32 %v180, %v182
    %v184 = vrot.slane %v167, %v183
    %v186 = vunpack.c.l.s4 1983009808
    %v187 = vunpack.c.0.s8 %v186
    %v188 = vlaneseq
    %v189 = vshrl.u32 %v188, 7
    %v190 = vsub.s32 %v187, %v189
    %v191 = vrot.slane %v177, %v190
    %v192 = vcombine.high %v184, %v184
    %v193 = vcombine.high %v191, %v191
    %v194 = vcombine.high %v172, %v172
    %v196 = vunpack.c.l.s4 1983009808
    %v197 = vunpack.c.0.s8 %v196
    %v198 = vlaneseq
    %v199 = vshrl.u32 %v198, 7
    %v200 = vsub.s32 %v197, %v199
    %v201 = vrot.slane %v172, %v200
    %v203 = vunpack.c.l.s4 1983009808
    %v204 = vunpack.c.0.s8 %v203
    %v205 = vlaneseq
    %v206 = vshrl.u32 %v205, 7
    %v207 = vsub.s32 %v204, %v206
    %v208 = vrot.slane %v194, %v207
    %v209 = vcombine.high %v201, %v201
    %v210 = vcombine.high %v208, %v208
    %vm219 = vcmask 254976
    %220 = vst.msk [vmem:[#allocation2] sm:$0x3] %vm219, %v184
    %221 = vst.msk [vmem:[#allocation2 + $0x2] sm:$0x3] %vm219, %v192
    %222 = vst.msk [vmem:[#allocation2 + $0x4] sm:$0x3] %vm219, %v191
    %223 = vst.msk [vmem:[#allocation2 + $0x6] sm:$0x3] %vm219, %v193
    %224 = vst.msk [vmem:[#allocation2 + $0x8] sm:$0x3] %vm219, %v201
    %225 = vst.msk [vmem:[#allocation2 + $0xa] sm:$0x3] %vm219, %v209
    %226 = vst.msk [vmem:[#allocation2 + $0xc] sm:$0x3] %vm219, %v208
    %227 = vst.msk [vmem:[#allocation2 + $0xe] sm:$0x3] %vm219, %v210
    %v228 = vld [vmem:[%s1] sm:$0x3]
    %v229 = vld [vmem:[#allocation2] sm:$0x3]
    %v230 = vld [vmem:[%s3] sm:$0xff]
    %v231 = vld [vmem:[%s3 + $0x8] sm:$0xff]
    %v232 = vld [vmem:[%s3 + $0x10] sm:$0xff]
    %v233 = vld [vmem:[%s3 + $0x18] sm:$0xff]
    %vm234 = vcmask 261120
    %v236 = vsel %vm234, %v228, 0
    %238 = vmatprep.subr.mxu0 0.0
    %239 = vmatpush1.msra.mxu0 0.0
    %240 = vmatprep.subr.mxu0 0.0
    %241 = vmatpush1.msra.mxu0 0.0
    %242 = vmatprep.subr.mxu0 0.0
    %243 = vmatpush1.msra.mxu0 0.0
    %244 = vmatprep.subr.mxu0 0.0
    %245 = vmatpush1.msra.mxu0 0.0
    %246 = vmatprep.subr.mxu0 0.0
    %247 = vmatpush1.msra.mxu0 0.0
    %248 = vmatprep.subr.mxu0 0.0
    %249 = vmatpush1.msra.mxu0 0.0
    %250 = vmatprep.subr.mxu0 0.0
    %251 = vmatpush1.msra.mxu0 0.0
    %252 = vmatprep.subr.mxu0 0.0
    %253 = vmatpush1.msra.mxu0 0.0
    %254 = vmatprep.subr.mxu0 0.0
    %255 = vmatpush1.msra.mxu0 0.0
    %256 = vmatprep.subr.mxu0 0.0
    %257 = vmatpush1.msra.mxu0 0.0
    %258 = vmatprep.subr.mxu0 0.0
    %259 = vmatpush1.msra.mxu0 0.0
    %260 = vmatprep.subr.mxu0 0.0
    %261 = vmatpush1.msra.mxu0 0.0
    %262 = vmatprep.subr.mxu0 0.0
    %263 = vmatpush1.msra.mxu0 %v233
    %264 = vmatprep.subr.mxu0 0.0
    %265 = vmatpush1.msra.mxu0 %v232
    %266 = vmatprep.subr.mxu0 0.0
    %267 = vmatpush1.msra.mxu0 %v231
    %268 = vmatprep.subr.mxu0 0.0
    %269 = vmatpush1.msra.mxu0 %v230
    %270 = vmatprep.subr.mxu0 0.0
    %271 = vmatpush2.msra.mxu0 0.0
    %272 = vmatprep.subr.mxu0 0.0
    %273 = vmatpush2.msra.mxu0 0.0
    %274 = vmatprep.subr.mxu0 0.0
    %275 = vmatpush2.msra.mxu0 0.0
    %276 = vmatprep.subr.mxu0 0.0
    %277 = vmatpush2.msra.mxu0 0.0
    %278 = vmatprep.subr.mxu0 0.0
    %279 = vmatpush2.msra.mxu0 0.0
    %280 = vmatprep.subr.mxu0 0.0
    %281 = vmatpush2.msra.mxu0 0.0
    %282 = vmatprep.subr.mxu0 0.0
    %283 = vmatpush2.msra.mxu0 0.0
    %284 = vmatprep.subr.mxu0 0.0
    %285 = vmatpush2.msra.mxu0 0.0
    %286 = vmatprep.subr.mxu0 0.0
    %287 = vmatpush2.msra.mxu0 0.0
    %288 = vmatprep.subr.mxu0 0.0
    %289 = vmatpush2.msra.mxu0 0.0
    %290 = vmatprep.subr.mxu0 0.0
    %291 = vmatpush2.msra.mxu0 0.0
    %292 = vmatprep.subr.mxu0 0.0
    %293 = vmatpush2.msra.mxu0 0.0
    %294 = vmatprep.subr.mxu0 0.0
    %295 = vmatpush2.msra.mxu0 0.0
    %296 = vmatprep.subr.mxu0 0.0
    %297 = vmatpush2.msra.mxu0 0.0
    %298 = vmatprep.subr.mxu0 0.0
    %299 = vmatpush2.msra.mxu0 0.0
    %300 = vmatprep.subr.mxu0 0.0
    %301 = vmatpush2.msra.mxu0 0.0
    %302 = vmatprep.mubr.f32.mxu0 0.0
    %303 = vmatmul.mubr.f32.gmra.mxu0 %v236
    %v304 = vpop.f32.mrf.mxu0
    %v305 = vadd.f32 0.0, %v304
    %v306 = vpop.f32.mrf.mxu0
    %307 = vdwg.mxu0
    %v308 = vadd.f32 %v229, %v305
    %v309 = vtanh.pop %v308
    %310 = vst.msk [vmem:[#allocation2] sm:$0x3] %vm219, %v309
    %s311 = scalar_lea.vmem [#allocation2], 2
    %v312 = vld [vmem:[%s311] sm:$0x3]
    %v313 = vld [vmem:[%s3] sm:$0xff]
    %v314 = vld [vmem:[%s3 + $0x8] sm:$0xff]
    %v315 = vld [vmem:[%s3 + $0x10] sm:$0xff]
    %v316 = vld [vmem:[%s3 + $0x18] sm:$0xff]
    %v318 = vsel %vm234, %v309, 0
    %320 = vmatprep.subr.mxu0 0.0
    %321 = vmatpush1.msra.mxu0 0.0
    %322 = vmatprep.subr.mxu0 0.0
    %323 = vmatpush1.msra.mxu0 0.0
    %324 = vmatprep.subr.mxu0 0.0
    %325 = vmatpush1.msra.mxu0 0.0
    %326 = vmatprep.subr.mxu0 0.0
    %327 = vmatpush1.msra.mxu0 0.0
    %328 = vmatprep.subr.mxu0 0.0
    %329 = vmatpush1.msra.mxu0 0.0
    %330 = vmatprep.subr.mxu0 0.0
    %331 = vmatpush1.msra.mxu0 0.0
    %332 = vmatprep.subr.mxu0 0.0
    %333 = vmatpush1.msra.mxu0 0.0
    %334 = vmatprep.subr.mxu0 0.0
    %335 = vmatpush1.msra.mxu0 0.0
    %336 = vmatprep.subr.mxu0 0.0
    %337 = vmatpush1.msra.mxu0 0.0
    %338 = vmatprep.subr.mxu0 0.0
    %339 = vmatpush1.msra.mxu0 0.0
    %340 = vmatprep.subr.mxu0 0.0
    %341 = vmatpush1.msra.mxu0 0.0
    %342 = vmatprep.subr.mxu0 0.0
    %343 = vmatpush1.msra.mxu0 0.0
    %344 = vmatprep.subr.mxu0 0.0
    %345 = vmatpush1.msra.mxu0 %v316
    %346 = vmatprep.subr.mxu0 0.0
    %347 = vmatpush1.msra.mxu0 %v315
    %348 = vmatprep.subr.mxu0 0.0
    %349 = vmatpush1.msra.mxu0 %v314
    %350 = vmatprep.subr.mxu0 0.0
    %351 = vmatpush1.msra.mxu0 %v313
    %352 = vmatprep.subr.mxu0 0.0
    %353 = vmatpush2.msra.mxu0 0.0
    %354 = vmatprep.subr.mxu0 0.0
    %355 = vmatpush2.msra.mxu0 0.0
    %356 = vmatprep.subr.mxu0 0.0
    %357 = vmatpush2.msra.mxu0 0.0
    %358 = vmatprep.subr.mxu0 0.0
    %359 = vmatpush2.msra.mxu0 0.0
    %360 = vmatprep.subr.mxu0 0.0
    %361 = vmatpush2.msra.mxu0 0.0
    %362 = vmatprep.subr.mxu0 0.0
    %363 = vmatpush2.msra.mxu0 0.0
    %364 = vmatprep.subr.mxu0 0.0
    %365 = vmatpush2.msra.mxu0 0.0
    %366 = vmatprep.subr.mxu0 0.0
    %367 = vmatpush2.msra.mxu0 0.0
    %368 = vmatprep.subr.mxu0 0.0
    %369 = vmatpush2.msra.mxu0 0.0
    %370 = vmatprep.subr.mxu0 0.0
    %371 = vmatpush2.msra.mxu0 0.0
    %372 = vmatprep.subr.mxu0 0.0
    %373 = vmatpush2.msra.mxu0 0.0
    %374 = vmatprep.subr.mxu0 0.0
    %375 = vmatpush2.msra.mxu0 0.0
    %376 = vmatprep.subr.mxu0 0.0
    %377 = vmatpush2.msra.mxu0 0.0
    %378 = vmatprep.subr.mxu0 0.0
    %379 = vmatpush2.msra.mxu0 0.0
    %380 = vmatprep.subr.mxu0 0.0
    %381 = vmatpush2.msra.mxu0 0.0
    %382 = vmatprep.subr.mxu0 0.0
    %383 = vmatpush2.msra.mxu0 0.0
    %384 = vmatprep.mubr.f32.mxu0 0.0
    %385 = vmatmul.mubr.f32.gmra.mxu0 %v318
    %v386 = vpop.f32.mrf.mxu0
    %v387 = vadd.f32 0.0, %v386
    %v388 = vpop.f32.mrf.mxu0
    %389 = vdwg.mxu0
    %v390 = vadd.f32 %v312, %v387
    %v391 = vtanh.pop %v390
    %392 = vst.msk [vmem:[%s311] sm:$0x3] %vm219, %v391
    %s393 = scalar_lea.vmem [#allocation2], 4
    %v394 = vld [vmem:[%s393] sm:$0x3]
    %v395 = vld [vmem:[%s3] sm:$0xff]
    %v396 = vld [vmem:[%s3 + $0x8] sm:$0xff]
    %v397 = vld [vmem:[%s3 + $0x10] sm:$0xff]
    %v398 = vld [vmem:[%s3 + $0x18] sm:$0xff]
    %v400 = vsel %vm234, %v391, 0
    %402 = vmatprep.subr.mxu0 0.0
    %403 = vmatpush1.msra.mxu0 0.0
    %404 = vmatprep.subr.mxu0 0.0
    %405 = vmatpush1.msra.mxu0 0.0
    %406 = vmatprep.subr.mxu0 0.0
    %407 = vmatpush1.msra.mxu0 0.0
    %408 = vmatprep.subr.mxu0 0.0
    %409 = vmatpush1.msra.mxu0 0.0
    %410 = vmatprep.subr.mxu0 0.0
    %411 = vmatpush1.msra.mxu0 0.0
    %412 = vmatprep.subr.mxu0 0.0
    %413 = vmatpush1.msra.mxu0 0.0
    %414 = vmatprep.subr.mxu0 0.0
    %415 = vmatpush1.msra.mxu0 0.0
    %416 = vmatprep.subr.mxu0 0.0
    %417 = vmatpush1.msra.mxu0 0.0
    %418 = vmatprep.subr.mxu0 0.0
    %419 = vmatpush1.msra.mxu0 0.0
    %420 = vmatprep.subr.mxu0 0.0
    %421 = vmatpush1.msra.mxu0 0.0
    %422 = vmatprep.subr.mxu0 0.0
    %423 = vmatpush1.msra.mxu0 0.0
    %424 = vmatprep.subr.mxu0 0.0
    %425 = vmatpush1.msra.mxu0 0.0
    %426 = vmatprep.subr.mxu0 0.0
    %427 = vmatpush1.msra.mxu0 %v398
    %428 = vmatprep.subr.mxu0 0.0
    %429 = vmatpush1.msra.mxu0 %v397
    %430 = vmatprep.subr.mxu0 0.0
    %431 = vmatpush1.msra.mxu0 %v396
    %432 = vmatprep.subr.mxu0 0.0
    %433 = vmatpush1.msra.mxu0 %v395
    %434 = vmatprep.subr.mxu0 0.0
    %435 = vmatpush2.msra.mxu0 0.0
    %436 = vmatprep.subr.mxu0 0.0
    %437 = vmatpush2.msra.mxu0 0.0
    %438 = vmatprep.subr.mxu0 0.0
    %439 = vmatpush2.msra.mxu0 0.0
    %440 = vmatprep.subr.mxu0 0.0
    %441 = vmatpush2.msra.mxu0 0.0
    %442 = vmatprep.subr.mxu0 0.0
    %443 = vmatpush2.msra.mxu0 0.0
    %444 = vmatprep.subr.mxu0 0.0
    %445 = vmatpush2.msra.mxu0 0.0
    %446 = vmatprep.subr.mxu0 0.0
    %447 = vmatpush2.msra.mxu0 0.0
    %448 = vmatprep.subr.mxu0 0.0
    %449 = vmatpush2.msra.mxu0 0.0
    %450 = vmatprep.subr.mxu0 0.0
    %451 = vmatpush2.msra.mxu0 0.0
    %452 = vmatprep.subr.mxu0 0.0
    %453 = vmatpush2.msra.mxu0 0.0
    %454 = vmatprep.subr.mxu0 0.0
    %455 = vmatpush2.msra.mxu0 0.0
    %456 = vmatprep.subr.mxu0 0.0
    %457 = vmatpush2.msra.mxu0 0.0
    %458 = vmatprep.subr.mxu0 0.0
    %459 = vmatpush2.msra.mxu0 0.0
    %460 = vmatprep.subr.mxu0 0.0
    %461 = vmatpush2.msra.mxu0 0.0
    %462 = vmatprep.subr.mxu0 0.0
    %463 = vmatpush2.msra.mxu0 0.0
    %464 = vmatprep.subr.mxu0 0.0
    %465 = vmatpush2.msra.mxu0 0.0
    %466 = vmatprep.mubr.f32.mxu0 0.0
    %467 = vmatmul.mubr.f32.gmra.mxu0 %v400
    %v468 = vpop.f32.mrf.mxu0
    %v469 = vadd.f32 0.0, %v468
    %v470 = vpop.f32.mrf.mxu0
    %471 = vdwg.mxu0
    %v472 = vadd.f32 %v394, %v469
    %v473 = vtanh.pop %v472
    %474 = vst.msk [vmem:[%s393] sm:$0x3] %vm219, %v473
    %s475 = scalar_lea.vmem [#allocation2], 6
    %v476 = vld [vmem:[%s475] sm:$0x3]
    %v477 = vld [vmem:[%s3] sm:$0xff]
    %v478 = vld [vmem:[%s3 + $0x8] sm:$0xff]
    %v479 = vld [vmem:[%s3 + $0x10] sm:$0xff]
    %v480 = vld [vmem:[%s3 + $0x18] sm:$0xff]
    %v482 = vsel %vm234, %v473, 0
    %484 = vmatprep.subr.mxu0 0.0
    %485 = vmatpush1.msra.mxu0 0.0
    %486 = vmatprep.subr.mxu0 0.0
    %487 = vmatpush1.msra.mxu0 0.0
    %488 = vmatprep.subr.mxu0 0.0
    %489 = vmatpush1.msra.mxu0 0.0
    %490 = vmatprep.subr.mxu0 0.0
    %491 = vmatpush1.msra.mxu0 0.0
    %492 = vmatprep.subr.mxu0 0.0
    %493 = vmatpush1.msra.mxu0 0.0
    %494 = vmatprep.subr.mxu0 0.0
    %495 = vmatpush1.msra.mxu0 0.0
    %496 = vmatprep.subr.mxu0 0.0
    %497 = vmatpush1.msra.mxu0 0.0
    %498 = vmatprep.subr.mxu0 0.0
    %499 = vmatpush1.msra.mxu0 0.0
    %500 = vmatprep.subr.mxu0 0.0
    %501 = vmatpush1.msra.mxu0 0.0
    %502 = vmatprep.subr.mxu0 0.0
    %503 = vmatpush1.msra.mxu0 0.0
    %504 = vmatprep.subr.mxu0 0.0
    %505 = vmatpush1.msra.mxu0 0.0
    %506 = vmatprep.subr.mxu0 0.0
    %507 = vmatpush1.msra.mxu0 0.0
    %508 = vmatprep.subr.mxu0 0.0
    %509 = vmatpush1.msra.mxu0 %v480
    %510 = vmatprep.subr.mxu0 0.0
    %511 = vmatpush1.msra.mxu0 %v479
    %512 = vmatprep.subr.mxu0 0.0
    %513 = vmatpush1.msra.mxu0 %v478
    %514 = vmatprep.subr.mxu0 0.0
    %515 = vmatpush1.msra.mxu0 %v477
    %516 = vmatprep.subr.mxu0 0.0
    %517 = vmatpush2.msra.mxu0 0.0
    %518 = vmatprep.subr.mxu0 0.0
    %519 = vmatpush2.msra.mxu0 0.0
    %520 = vmatprep.subr.mxu0 0.0
    %521 = vmatpush2.msra.mxu0 0.0
    %522 = vmatprep.subr.mxu0 0.0
    %523 = vmatpush2.msra.mxu0 0.0
    %524 = vmatprep.subr.mxu0 0.0
    %525 = vmatpush2.msra.mxu0 0.0
    %526 = vmatprep.subr.mxu0 0.0
    %527 = vmatpush2.msra.mxu0 0.0
    %528 = vmatprep.subr.mxu0 0.0
    %529 = vmatpush2.msra.mxu0 0.0
    %530 = vmatprep.subr.mxu0 0.0
    %531 = vmatpush2.msra.mxu0 0.0
    %532 = vmatprep.subr.mxu0 0.0
    %533 = vmatpush2.msra.mxu0 0.0
    %534 = vmatprep.subr.mxu0 0.0
    %535 = vmatpush2.msra.mxu0 0.0
    %536 = vmatprep.subr.mxu0 0.0
    %537 = vmatpush2.msra.mxu0 0.0
    %538 = vmatprep.subr.mxu0 0.0
    %539 = vmatpush2.msra.mxu0 0.0
    %540 = vmatprep.subr.mxu0 0.0
    %541 = vmatpush2.msra.mxu0 0.0
    %542 = vmatprep.subr.mxu0 0.0
    %543 = vmatpush2.msra.mxu0 0.0
    %544 = vmatprep.subr.mxu0 0.0
    %545 = vmatpush2.msra.mxu0 0.0
    %546 = vmatprep.subr.mxu0 0.0
    %547 = vmatpush2.msra.mxu0 0.0
    %548 = vmatprep.mubr.f32.mxu0 0.0
    %549 = vmatmul.mubr.f32.gmra.mxu0 %v482
    %v550 = vpop.f32.mrf.mxu0
    %v551 = vadd.f32 0.0, %v550
    %v552 = vpop.f32.mrf.mxu0
    %553 = vdwg.mxu0
    %v554 = vadd.f32 %v476, %v551
    %v555 = vtanh.pop %v554
    %556 = vst.msk [vmem:[%s475] sm:$0x3] %vm219, %v555
    %s557 = scalar_lea.vmem [#allocation2], 8
    %v558 = vld [vmem:[%s557] sm:$0x3]
    %v559 = vld [vmem:[%s3] sm:$0xff]
    %v560 = vld [vmem:[%s3 + $0x8] sm:$0xff]
    %v561 = vld [vmem:[%s3 + $0x10] sm:$0xff]
    %v562 = vld [vmem:[%s3 + $0x18] sm:$0xff]
    %v564 = vsel %vm234, %v555, 0
    %566 = vmatprep.subr.mxu0 0.0
    %567 = vmatpush1.msra.mxu0 0.0
    %568 = vmatprep.subr.mxu0 0.0
    %569 = vmatpush1.msra.mxu0 0.0
    %570 = vmatprep.subr.mxu0 0.0
    %571 = vmatpush1.msra.mxu0 0.0
    %572 = vmatprep.subr.mxu0 0.0
    %573 = vmatpush1.msra.mxu0 0.0
    %574 = vmatprep.subr.mxu0 0.0
    %575 = vmatpush1.msra.mxu0 0.0
    %576 = vmatprep.subr.mxu0 0.0
    %577 = vmatpush1.msra.mxu0 0.0
    %578 = vmatprep.subr.mxu0 0.0
    %579 = vmatpush1.msra.mxu0 0.0
    %580 = vmatprep.subr.mxu0 0.0
    %581 = vmatpush1.msra.mxu0 0.0
    %582 = vmatprep.subr.mxu0 0.0
    %583 = vmatpush1.msra.mxu0 0.0
    %584 = vmatprep.subr.mxu0 0.0
    %585 = vmatpush1.msra.mxu0 0.0
    %586 = vmatprep.subr.mxu0 0.0
    %587 = vmatpush1.msra.mxu0 0.0
    %588 = vmatprep.subr.mxu0 0.0
    %589 = vmatpush1.msra.mxu0 0.0
    %590 = vmatprep.subr.mxu0 0.0
    %591 = vmatpush1.msra.mxu0 %v562
    %592 = vmatprep.subr.mxu0 0.0
    %593 = vmatpush1.msra.mxu0 %v561
    %594 = vmatprep.subr.mxu0 0.0
    %595 = vmatpush1.msra.mxu0 %v560
    %596 = vmatprep.subr.mxu0 0.0
    %597 = vmatpush1.msra.mxu0 %v559
    %598 = vmatprep.subr.mxu0 0.0
    %599 = vmatpush2.msra.mxu0 0.0
    %600 = vmatprep.subr.mxu0 0.0
    %601 = vmatpush2.msra.mxu0 0.0
    %602 = vmatprep.subr.mxu0 0.0
    %603 = vmatpush2.msra.mxu0 0.0
    %604 = vmatprep.subr.mxu0 0.0
    %605 = vmatpush2.msra.mxu0 0.0
    %606 = vmatprep.subr.mxu0 0.0
    %607 = vmatpush2.msra.mxu0 0.0
    %608 = vmatprep.subr.mxu0 0.0
    %609 = vmatpush2.msra.mxu0 0.0
    %610 = vmatprep.subr.mxu0 0.0
    %611 = vmatpush2.msra.mxu0 0.0
    %612 = vmatprep.subr.mxu0 0.0
    %613 = vmatpush2.msra.mxu0 0.0
    %614 = vmatprep.subr.mxu0 0.0
    %615 = vmatpush2.msra.mxu0 0.0
    %616 = vmatprep.subr.mxu0 0.0
    %617 = vmatpush2.msra.mxu0 0.0
    %618 = vmatprep.subr.mxu0 0.0
    %619 = vmatpush2.msra.mxu0 0.0
    %620 = vmatprep.subr.mxu0 0.0
    %621 = vmatpush2.msra.mxu0 0.0
    %622 = vmatprep.subr.mxu0 0.0
    %623 = vmatpush2.msra.mxu0 0.0
    %624 = vmatprep.subr.mxu0 0.0
    %625 = vmatpush2.msra.mxu0 0.0
    %626 = vmatprep.subr.mxu0 0.0
    %627 = vmatpush2.msra.mxu0 0.0
    %628 = vmatprep.subr.mxu0 0.0
    %629 = vmatpush2.msra.mxu0 0.0
    %630 = vmatprep.mubr.f32.mxu0 0.0
    %631 = vmatmul.mubr.f32.gmra.mxu0 %v564
    %v632 = vpop.f32.mrf.mxu0
    %v633 = vadd.f32 0.0, %v632
    %v634 = vpop.f32.mrf.mxu0
    %635 = vdwg.mxu0
    %v636 = vadd.f32 %v558, %v633
    %v637 = vtanh.pop %v636
    %638 = vst.msk [vmem:[%s557] sm:$0x3] %vm219, %v637
    %s639 = scalar_lea.vmem [#allocation2], 10
    %v640 = vld [vmem:[%s639] sm:$0x3]
    %v641 = vld [vmem:[%s3] sm:$0xff]
    %v642 = vld [vmem:[%s3 + $0x8] sm:$0xff]
    %v643 = vld [vmem:[%s3 + $0x10] sm:$0xff]
    %v644 = vld [vmem:[%s3 + $0x18] sm:$0xff]
    %v646 = vsel %vm234, %v637, 0
    %648 = vmatprep.subr.mxu0 0.0
    %649 = vmatpush1.msra.mxu0 0.0
    %650 = vmatprep.subr.mxu0 0.0
    %651 = vmatpush1.msra.mxu0 0.0
    %652 = vmatprep.subr.mxu0 0.0
    %653 = vmatpush1.msra.mxu0 0.0
    %654 = vmatprep.subr.mxu0 0.0
    %655 = vmatpush1.msra.mxu0 0.0
    %656 = vmatprep.subr.mxu0 0.0
    %657 = vmatpush1.msra.mxu0 0.0
    %658 = vmatprep.subr.mxu0 0.0
    %659 = vmatpush1.msra.mxu0 0.0
    %660 = vmatprep.subr.mxu0 0.0
    %661 = vmatpush1.msra.mxu0 0.0
    %662 = vmatprep.subr.mxu0 0.0
    %663 = vmatpush1.msra.mxu0 0.0
    %664 = vmatprep.subr.mxu0 0.0
    %665 = vmatpush1.msra.mxu0 0.0
    %666 = vmatprep.subr.mxu0 0.0
    %667 = vmatpush1.msra.mxu0 0.0
    %668 = vmatprep.subr.mxu0 0.0
    %669 = vmatpush1.msra.mxu0 0.0
    %670 = vmatprep.subr.mxu0 0.0
    %671 = vmatpush1.msra.mxu0 0.0
    %672 = vmatprep.subr.mxu0 0.0
    %673 = vmatpush1.msra.mxu0 %v644
    %674 = vmatprep.subr.mxu0 0.0
    %675 = vmatpush1.msra.mxu0 %v643
    %676 = vmatprep.subr.mxu0 0.0
    %677 = vmatpush1.msra.mxu0 %v642
    %678 = vmatprep.subr.mxu0 0.0
    %679 = vmatpush1.msra.mxu0 %v641
    %680 = vmatprep.subr.mxu0 0.0
    %681 = vmatpush2.msra.mxu0 0.0
    %682 = vmatprep.subr.mxu0 0.0
    %683 = vmatpush2.msra.mxu0 0.0
    %684 = vmatprep.subr.mxu0 0.0
    %685 = vmatpush2.msra.mxu0 0.0
    %686 = vmatprep.subr.mxu0 0.0
    %687 = vmatpush2.msra.mxu0 0.0
    %688 = vmatprep.subr.mxu0 0.0
    %689 = vmatpush2.msra.mxu0 0.0
    %690 = vmatprep.subr.mxu0 0.0
    %691 = vmatpush2.msra.mxu0 0.0
    %692 = vmatprep.subr.mxu0 0.0
    %693 = vmatpush2.msra.mxu0 0.0
    %694 = vmatprep.subr.mxu0 0.0
    %695 = vmatpush2.msra.mxu0 0.0
    %696 = vmatprep.subr.mxu0 0.0
    %697 = vmatpush2.msra.mxu0 0.0
    %698 = vmatprep.subr.mxu0 0.0
    %699 = vmatpush2.msra.mxu0 0.0
    %700 = vmatprep.subr.mxu0 0.0
    %701 = vmatpush2.msra.mxu0 0.0
    %702 = vmatprep.subr.mxu0 0.0
    %703 = vmatpush2.msra.mxu0 0.0
    %704 = vmatprep.subr.mxu0 0.0
    %705 = vmatpush2.msra.mxu0 0.0
    %706 = vmatprep.subr.mxu0 0.0
    %707 = vmatpush2.msra.mxu0 0.0
    %708 = vmatprep.subr.mxu0 0.0
    %709 = vmatpush2.msra.mxu0 0.0
    %710 = vmatprep.subr.mxu0 0.0
    %711 = vmatpush2.msra.mxu0 0.0
    %712 = vmatprep.mubr.f32.mxu0 0.0
    %713 = vmatmul.mubr.f32.gmra.mxu0 %v646
    %v714 = vpop.f32.mrf.mxu0
    %v715 = vadd.f32 0.0, %v714
    %v716 = vpop.f32.mrf.mxu0
    %717 = vdwg.mxu0
    %v718 = vadd.f32 %v640, %v715
    %v719 = vtanh.pop %v718
    %720 = vst.msk [vmem:[%s639] sm:$0x3] %vm219, %v719
    %s721 = scalar_lea.vmem [#allocation2], 12
    %v722 = vld [vmem:[%s721] sm:$0x3]
    %v723 = vld [vmem:[%s3] sm:$0xff]
    %v724 = vld [vmem:[%s3 + $0x8] sm:$0xff]
    %v725 = vld [vmem:[%s3 + $0x10] sm:$0xff]
    %v726 = vld [vmem:[%s3 + $0x18] sm:$0xff]
    %v728 = vsel %vm234, %v719, 0
    %730 = vmatprep.subr.mxu0 0.0
    %731 = vmatpush1.msra.mxu0 0.0
    %732 = vmatprep.subr.mxu0 0.0
    %733 = vmatpush1.msra.mxu0 0.0
    %734 = vmatprep.subr.mxu0 0.0
    %735 = vmatpush1.msra.mxu0 0.0
    %736 = vmatprep.subr.mxu0 0.0
    %737 = vmatpush1.msra.mxu0 0.0
    %738 = vmatprep.subr.mxu0 0.0
    %739 = vmatpush1.msra.mxu0 0.0
    %740 = vmatprep.subr.mxu0 0.0
    %741 = vmatpush1.msra.mxu0 0.0
    %742 = vmatprep.subr.mxu0 0.0
    %743 = vmatpush1.msra.mxu0 0.0
    %744 = vmatprep.subr.mxu0 0.0
    %745 = vmatpush1.msra.mxu0 0.0
    %746 = vmatprep.subr.mxu0 0.0
    %747 = vmatpush1.msra.mxu0 0.0
    %748 = vmatprep.subr.mxu0 0.0
    %749 = vmatpush1.msra.mxu0 0.0
    %750 = vmatprep.subr.mxu0 0.0
    %751 = vmatpush1.msra.mxu0 0.0
    %752 = vmatprep.subr.mxu0 0.0
    %753 = vmatpush1.msra.mxu0 0.0
    %754 = vmatprep.subr.mxu0 0.0
    %755 = vmatpush1.msra.mxu0 %v726
    %756 = vmatprep.subr.mxu0 0.0
    %757 = vmatpush1.msra.mxu0 %v725
    %758 = vmatprep.subr.mxu0 0.0
    %759 = vmatpush1.msra.mxu0 %v724
    %760 = vmatprep.subr.mxu0 0.0
    %761 = vmatpush1.msra.mxu0 %v723
    %762 = vmatprep.subr.mxu0 0.0
    %763 = vmatpush2.msra.mxu0 0.0
    %764 = vmatprep.subr.mxu0 0.0
    %765 = vmatpush2.msra.mxu0 0.0
    %766 = vmatprep.subr.mxu0 0.0
    %767 = vmatpush2.msra.mxu0 0.0
    %768 = vmatprep.subr.mxu0 0.0
    %769 = vmatpush2.msra.mxu0 0.0
    %770 = vmatprep.subr.mxu0 0.0
    %771 = vmatpush2.msra.mxu0 0.0
    %772 = vmatprep.subr.mxu0 0.0
    %773 = vmatpush2.msra.mxu0 0.0
    %774 = vmatprep.subr.mxu0 0.0
    %775 = vmatpush2.msra.mxu0 0.0
    %776 = vmatprep.subr.mxu0 0.0
    %777 = vmatpush2.msra.mxu0 0.0
    %778 = vmatprep.subr.mxu0 0.0
    %779 = vmatpush2.msra.mxu0 0.0
    %780 = vmatprep.subr.mxu0 0.0
    %781 = vmatpush2.msra.mxu0 0.0
    %782 = vmatprep.subr.mxu0 0.0
    %783 = vmatpush2.msra.mxu0 0.0
    %784 = vmatprep.subr.mxu0 0.0
    %785 = vmatpush2.msra.mxu0 0.0
    %786 = vmatprep.subr.mxu0 0.0
    %787 = vmatpush2.msra.mxu0 0.0
    %788 = vmatprep.subr.mxu0 0.0
    %789 = vmatpush2.msra.mxu0 0.0
    %790 = vmatprep.subr.mxu0 0.0
    %791 = vmatpush2.msra.mxu0 0.0
    %792 = vmatprep.subr.mxu0 0.0
    %793 = vmatpush2.msra.mxu0 0.0
    %794 = vmatprep.mubr.f32.mxu0 0.0
    %795 = vmatmul.mubr.f32.gmra.mxu0 %v728
    %v796 = vpop.f32.mrf.mxu0
    %v797 = vadd.f32 0.0, %v796
    %v798 = vpop.f32.mrf.mxu0
    %799 = vdwg.mxu0
    %v800 = vadd.f32 %v722, %v797
    %v801 = vtanh.pop %v800
    %802 = vst.msk [vmem:[%s721] sm:$0x3] %vm219, %v801
    %s803 = scalar_lea.vmem [#allocation2], 14
    %v804 = vld [vmem:[%s803] sm:$0x3]
    %v805 = vld [vmem:[%s3] sm:$0xff]
    %v806 = vld [vmem:[%s3 + $0x8] sm:$0xff]
    %v807 = vld [vmem:[%s3 + $0x10] sm:$0xff]
    %v808 = vld [vmem:[%s3 + $0x18] sm:$0xff]
    %v810 = vsel %vm234, %v801, 0
    %812 = vmatprep.subr.mxu0 0.0
    %813 = vmatpush1.msra.mxu0 0.0
    %814 = vmatprep.subr.mxu0 0.0
    %815 = vmatpush1.msra.mxu0 0.0
    %816 = vmatprep.subr.mxu0 0.0
    %817 = vmatpush1.msra.mxu0 0.0
    %818 = vmatprep.subr.mxu0 0.0
    %819 = vmatpush1.msra.mxu0 0.0
    %820 = vmatprep.subr.mxu0 0.0
    %821 = vmatpush1.msra.mxu0 0.0
    %822 = vmatprep.subr.mxu0 0.0
    %823 = vmatpush1.msra.mxu0 0.0
    %824 = vmatprep.subr.mxu0 0.0
    %825 = vmatpush1.msra.mxu0 0.0
    %826 = vmatprep.subr.mxu0 0.0
    %827 = vmatpush1.msra.mxu0 0.0
    %828 = vmatprep.subr.mxu0 0.0
    %829 = vmatpush1.msra.mxu0 0.0
    %830 = vmatprep.subr.mxu0 0.0
    %831 = vmatpush1.msra.mxu0 0.0
    %832 = vmatprep.subr.mxu0 0.0
    %833 = vmatpush1.msra.mxu0 0.0
    %834 = vmatprep.subr.mxu0 0.0
    %835 = vmatpush1.msra.mxu0 0.0
    %836 = vmatprep.subr.mxu0 0.0
    %837 = vmatpush1.msra.mxu0 %v808
    %838 = vmatprep.subr.mxu0 0.0
    %839 = vmatpush1.msra.mxu0 %v807
    %840 = vmatprep.subr.mxu0 0.0
    %841 = vmatpush1.msra.mxu0 %v806
    %842 = vmatprep.subr.mxu0 0.0
    %843 = vmatpush1.msra.mxu0 %v805
    %844 = vmatprep.subr.mxu0 0.0
    %845 = vmatpush2.msra.mxu0 0.0
    %846 = vmatprep.subr.mxu0 0.0
    %847 = vmatpush2.msra.mxu0 0.0
    %848 = vmatprep.subr.mxu0 0.0
    %849 = vmatpush2.msra.mxu0 0.0
    %850 = vmatprep.subr.mxu0 0.0
    %851 = vmatpush2.msra.mxu0 0.0
    %852 = vmatprep.subr.mxu0 0.0
    %853 = vmatpush2.msra.mxu0 0.0
    %854 = vmatprep.subr.mxu0 0.0
    %855 = vmatpush2.msra.mxu0 0.0
    %856 = vmatprep.subr.mxu0 0.0
    %857 = vmatpush2.msra.mxu0 0.0
    %858 = vmatprep.subr.mxu0 0.0
    %859 = vmatpush2.msra.mxu0 0.0
    %860 = vmatprep.subr.mxu0 0.0
    %861 = vmatpush2.msra.mxu0 0.0
    %862 = vmatprep.subr.mxu0 0.0
    %863 = vmatpush2.msra.mxu0 0.0
    %864 = vmatprep.subr.mxu0 0.0
    %865 = vmatpush2.msra.mxu0 0.0
    %866 = vmatprep.subr.mxu0 0.0
    %867 = vmatpush2.msra.mxu0 0.0
    %868 = vmatprep.subr.mxu0 0.0
    %869 = vmatpush2.msra.mxu0 0.0
    %870 = vmatprep.subr.mxu0 0.0
    %871 = vmatpush2.msra.mxu0 0.0
    %872 = vmatprep.subr.mxu0 0.0
    %873 = vmatpush2.msra.mxu0 0.0
    %874 = vmatprep.subr.mxu0 0.0
    %875 = vmatpush2.msra.mxu0 0.0
    %876 = vmatprep.mubr.f32.mxu0 0.0
    %877 = vmatmul.mubr.f32.gmra.mxu0 %v810
    %v878 = vpop.f32.mrf.mxu0
    %v879 = vadd.f32 0.0, %v878
    %v880 = vpop.f32.mrf.mxu0
    %881 = vdwg.mxu0
    %v882 = vadd.f32 %v804, %v879
    %v883 = vtanh.pop %v882
    %884 = vst.msk [vmem:[%s803] sm:$0x3] %vm219, %v883
    %v885 = vld [vmem:[#allocation2] sm:$0x3]
    %v886 = vld [vmem:[#allocation2 + $0x2] sm:$0x3]
    %v887 = vld [vmem:[#allocation2 + $0x4] sm:$0x3]
    %v888 = vld [vmem:[#allocation2 + $0x6] sm:$0x3]
    %v889 = vld [vmem:[#allocation2 + $0x8] sm:$0x3]
    %v890 = vld [vmem:[#allocation2 + $0xa] sm:$0x3]
    %v891 = vld [vmem:[#allocation2 + $0xc] sm:$0x3]
    %v892 = vld [vmem:[#allocation2 + $0xe] sm:$0x3]
    %v893 = vld [vmem:[%s5] sm:$0xff]
    %v894 = vld [vmem:[%s5 + $0x8] sm:$0xff]
    %v895 = vld [vmem:[%s5 + $0x10] sm:$0xff]
    %v896 = vld [vmem:[%s5 + $0x18] sm:$0xff]
    %v897 = vld [vmem:[%s7] sm:$0x1]
    %v899 = vlaneseq
    %v900 = vshrl.u32 %v899, 7
    %v901 = vsub.s32 0, %v900
    %v902 = vrot.slane %v897, %v901
    %v912 = vcombine.low %v885, %v886
    %v913 = vcombine.low %v887, %v888
    %v915 = vunpack.c.l.s4 1983009808
    %v916 = vunpack.c.0.s8 %v915
    %v917 = vlaneseq
    %v918 = vshrl.u32 %v917, 7
    %v919 = vsub.s32 %v916, %v918
    %v920 = vrot.slane %v912, %v919
    %v922 = vunpack.c.l.s4 1983009808
    %v923 = vunpack.c.0.s8 %v922
    %v924 = vlaneseq
    %v925 = vshrl.u32 %v924, 7
    %v926 = vsub.s32 %v923, %v925
    %v927 = vrot.slane %v913, %v926
    %v928 = vcombine.low %v920, %v927
    %v929 = vcombine.low %v889, %v890
    %v930 = vcombine.low %v891, %v892
    %v932 = vunpack.c.l.s4 1983009808
    %v933 = vunpack.c.0.s8 %v932
    %v934 = vlaneseq
    %v935 = vshrl.u32 %v934, 7
    %v936 = vsub.s32 %v933, %v935
    %v937 = vrot.slane %v929, %v936
    %v939 = vunpack.c.l.s4 1983009808
    %v940 = vunpack.c.0.s8 %v939
    %v941 = vlaneseq
    %v942 = vshrl.u32 %v941, 7
    %v943 = vsub.s32 %v940, %v942
    %v944 = vrot.slane %v930, %v943
    %v945 = vcombine.low %v937, %v944
    %v946 = vsel %vm234, %v928, 0
    %v948 = vsel %vm234, %v945, 0
    %950 = vmatprep.subr.mxu0 0.0
    %951 = vmatpush1.msra.mxu0 0.0
    %952 = vmatprep.subr.mxu0 0.0
    %953 = vmatpush1.msra.mxu0 0.0
    %954 = vmatprep.subr.mxu0 0.0
    %955 = vmatpush1.msra.mxu0 0.0
    %956 = vmatprep.subr.mxu0 0.0
    %957 = vmatpush1.msra.mxu0 0.0
    %958 = vmatprep.subr.mxu0 0.0
    %959 = vmatpush1.msra.mxu0 0.0
    %960 = vmatprep.subr.mxu0 0.0
    %961 = vmatpush1.msra.mxu0 0.0
    %962 = vmatprep.subr.mxu0 0.0
    %963 = vmatpush1.msra.mxu0 0.0
    %964 = vmatprep.subr.mxu0 0.0
    %965 = vmatpush1.msra.mxu0 0.0
    %966 = vmatprep.subr.mxu0 0.0
    %967 = vmatpush1.msra.mxu0 0.0
    %968 = vmatprep.subr.mxu0 0.0
    %969 = vmatpush1.msra.mxu0 0.0
    %970 = vmatprep.subr.mxu0 0.0
    %971 = vmatpush1.msra.mxu0 0.0
    %972 = vmatprep.subr.mxu0 0.0
    %973 = vmatpush1.msra.mxu0 0.0
    %974 = vmatprep.subr.mxu0 0.0
    %975 = vmatpush1.msra.mxu0 %v896
    %976 = vmatprep.subr.mxu0 0.0
    %977 = vmatpush1.msra.mxu0 %v895
    %978 = vmatprep.subr.mxu0 0.0
    %979 = vmatpush1.msra.mxu0 %v894
    %980 = vmatprep.subr.mxu0 0.0
    %981 = vmatpush1.msra.mxu0 %v893
    %982 = vmatprep.subr.mxu0 0.0
    %983 = vmatpush2.msra.mxu0 0.0
    %984 = vmatprep.subr.mxu0 0.0
    %985 = vmatpush2.msra.mxu0 0.0
    %986 = vmatprep.subr.mxu0 0.0
    %987 = vmatpush2.msra.mxu0 0.0
    %988 = vmatprep.subr.mxu0 0.0
    %989 = vmatpush2.msra.mxu0 0.0
    %990 = vmatprep.subr.mxu0 0.0
    %991 = vmatpush2.msra.mxu0 0.0
    %992 = vmatprep.subr.mxu0 0.0
    %993 = vmatpush2.msra.mxu0 0.0
    %994 = vmatprep.subr.mxu0 0.0
    %995 = vmatpush2.msra.mxu0 0.0
    %996 = vmatprep.subr.mxu0 0.0
    %997 = vmatpush2.msra.mxu0 0.0
    %998 = vmatprep.subr.mxu0 0.0
    %999 = vmatpush2.msra.mxu0 0.0
    %1000 = vmatprep.subr.mxu0 0.0
    %1001 = vmatpush2.msra.mxu0 0.0
    %1002 = vmatprep.subr.mxu0 0.0
    %1003 = vmatpush2.msra.mxu0 0.0
    %1004 = vmatprep.subr.mxu0 0.0
    %1005 = vmatpush2.msra.mxu0 0.0
    %1006 = vmatprep.subr.mxu0 0.0
    %1007 = vmatpush2.msra.mxu0 0.0
    %1008 = vmatprep.subr.mxu0 0.0
    %1009 = vmatpush2.msra.mxu0 0.0
    %1010 = vmatprep.subr.mxu0 0.0
    %1011 = vmatpush2.msra.mxu0 0.0
    %1012 = vmatprep.subr.mxu0 0.0
    %1013 = vmatpush2.msra.mxu0 0.0
    %1014 = vmatprep.mubr.f32.mxu0 0.0
    %1015 = vmatmul.mubr.f32.gmra.mxu0 %v946
    %v1016 = vpop.f32.mrf.mxu0
    %v1017 = vadd.f32 %v902, %v1016
    %v1018 = vpop.f32.mrf.mxu0
    %1019 = vmatprep.mubr.f32.mxu0 0.0
    %1020 = vmatmul.mubr.f32.gmra.mxu0 %v948
    %v1021 = vpop.f32.mrf.mxu0
    %v1022 = vadd.f32 %v902, %v1021
    %v1023 = vpop.f32.mrf.mxu0
    %1024 = vdwg.mxu0
    %v1027 = vcombine.high %v1017, %v1017
    %v1029 = vunpack.c.l.s4 1983009808
    %v1030 = vunpack.c.0.s8 %v1029
    %v1031 = vlaneseq
    %v1032 = vshrl.u32 %v1031, 7
    %v1033 = vsub.s32 %v1030, %v1032
    %v1034 = vrot.slane %v1017, %v1033
    %v1036 = vunpack.c.l.s4 1983009808
    %v1037 = vunpack.c.0.s8 %v1036
    %v1038 = vlaneseq
    %v1039 = vshrl.u32 %v1038, 7
    %v1040 = vsub.s32 %v1037, %v1039
    %v1041 = vrot.slane %v1027, %v1040
    %v1042 = vcombine.high %v1034, %v1034
    %v1043 = vcombine.high %v1041, %v1041
    %v1044 = vcombine.high %v1022, %v1022
    %v1046 = vunpack.c.l.s4 1983009808
    %v1047 = vunpack.c.0.s8 %v1046
    %v1048 = vlaneseq
    %v1049 = vshrl.u32 %v1048, 7
    %v1050 = vsub.s32 %v1047, %v1049
    %v1051 = vrot.slane %v1022, %v1050
    %v1053 = vunpack.c.l.s4 1983009808
    %v1054 = vunpack.c.0.s8 %v1053
    %v1055 = vlaneseq
    %v1056 = vshrl.u32 %v1055, 7
    %v1057 = vsub.s32 %v1054, %v1056
    %v1058 = vrot.slane %v1044, %v1057
    %v1059 = vcombine.high %v1051, %v1051
    %v1060 = vcombine.high %v1058, %v1058
    %1069 = vst.msk [vmem:[#allocation2] sm:$0x3] %vm219, %v1034
    %1070 = vst.msk [vmem:[#allocation2 + $0x2] sm:$0x3] %vm219, %v1042
    %1071 = vst.msk [vmem:[#allocation2 + $0x4] sm:$0x3] %vm219, %v1041
    %1072 = vst.msk [vmem:[#allocation2 + $0x6] sm:$0x3] %vm219, %v1043
    %1073 = vst.msk [vmem:[#allocation2 + $0x8] sm:$0x3] %vm219, %v1051
    %1074 = vst.msk [vmem:[#allocation2 + $0xa] sm:$0x3] %vm219, %v1059
    %1075 = vst.msk [vmem:[#allocation2 + $0xc] sm:$0x3] %vm219, %v1058
    %1076 = vst.msk [vmem:[#allocation2 + $0xe] sm:$0x3] %vm219, %v1060
    %s1077 = scalar_lea.vmem %s1, 2
    %v1078 = vld [vmem:[%s1077] sm:$0x3]
    %v1079 = vld [vmem:[#allocation2] sm:$0x3]
    %v1080 = vld [vmem:[%s6] sm:$0xff]
    %v1081 = vld [vmem:[%s6 + $0x8] sm:$0xff]
    %v1082 = vld [vmem:[%s6 + $0x10] sm:$0xff]
    %v1083 = vld [vmem:[%s6 + $0x18] sm:$0xff]
    %v1085 = vsel %vm234, %v1078, 0
    %1087 = vmatprep.subr.mxu0 0.0
    %1088 = vmatpush1.msra.mxu0 0.0
    %1089 = vmatprep.subr.mxu0 0.0
    %1090 = vmatpush1.msra.mxu0 0.0
    %1091 = vmatprep.subr.mxu0 0.0
    %1092 = vmatpush1.msra.mxu0 0.0
    %1093 = vmatprep.subr.mxu0 0.0
    %1094 = vmatpush1.msra.mxu0 0.0
    %1095 = vmatprep.subr.mxu0 0.0
    %1096 = vmatpush1.msra.mxu0 0.0
    %1097 = vmatprep.subr.mxu0 0.0
    %1098 = vmatpush1.msra.mxu0 0.0
    %1099 = vmatprep.subr.mxu0 0.0
    %1100 = vmatpush1.msra.mxu0 0.0
    %1101 = vmatprep.subr.mxu0 0.0
    %1102 = vmatpush1.msra.mxu0 0.0
    %1103 = vmatprep.subr.mxu0 0.0
    %1104 = vmatpush1.msra.mxu0 0.0
    %1105 = vmatprep.subr.mxu0 0.0
    %1106 = vmatpush1.msra.mxu0 0.0
    %1107 = vmatprep.subr.mxu0 0.0
    %1108 = vmatpush1.msra.mxu0 0.0
    %1109 = vmatprep.subr.mxu0 0.0
    %1110 = vmatpush1.msra.mxu0 0.0
    %1111 = vmatprep.subr.mxu0 0.0
    %1112 = vmatpush1.msra.mxu0 %v1083
    %1113 = vmatprep.subr.mxu0 0.0
    %1114 = vmatpush1.msra.mxu0 %v1082
    %1115 = vmatprep.subr.mxu0 0.0
    %1116 = vmatpush1.msra.mxu0 %v1081
    %1117 = vmatprep.subr.mxu0 0.0
    %1118 = vmatpush1.msra.mxu0 %v1080
    %1119 = vmatprep.subr.mxu0 0.0
    %1120 = vmatpush2.msra.mxu0 0.0
    %1121 = vmatprep.subr.mxu0 0.0
    %1122 = vmatpush2.msra.mxu0 0.0
    %1123 = vmatprep.subr.mxu0 0.0
    %1124 = vmatpush2.msra.mxu0 0.0
    %1125 = vmatprep.subr.mxu0 0.0
    %1126 = vmatpush2.msra.mxu0 0.0
    %1127 = vmatprep.subr.mxu0 0.0
    %1128 = vmatpush2.msra.mxu0 0.0
    %1129 = vmatprep.subr.mxu0 0.0
    %1130 = vmatpush2.msra.mxu0 0.0
    %1131 = vmatprep.subr.mxu0 0.0
    %1132 = vmatpush2.msra.mxu0 0.0
    %1133 = vmatprep.subr.mxu0 0.0
    %1134 = vmatpush2.msra.mxu0 0.0
    %1135 = vmatprep.subr.mxu0 0.0
    %1136 = vmatpush2.msra.mxu0 0.0
    %1137 = vmatprep.subr.mxu0 0.0
    %1138 = vmatpush2.msra.mxu0 0.0
    %1139 = vmatprep.subr.mxu0 0.0
    %1140 = vmatpush2.msra.mxu0 0.0
    %1141 = vmatprep.subr.mxu0 0.0
    %1142 = vmatpush2.msra.mxu0 0.0
    %1143 = vmatprep.subr.mxu0 0.0
    %1144 = vmatpush2.msra.mxu0 0.0
    %1145 = vmatprep.subr.mxu0 0.0
    %1146 = vmatpush2.msra.mxu0 0.0
    %1147 = vmatprep.subr.mxu0 0.0
    %1148 = vmatpush2.msra.mxu0 0.0
    %1149 = vmatprep.subr.mxu0 0.0
    %1150 = vmatpush2.msra.mxu0 0.0
    %1151 = vmatprep.mubr.f32.mxu0 0.0
    %1152 = vmatmul.mubr.f32.gmra.mxu0 %v1085
    %v1153 = vpop.f32.mrf.mxu0
    %v1154 = vadd.f32 0.0, %v1153
    %v1155 = vpop.f32.mrf.mxu0
    %1156 = vdwg.mxu0
    %v1157 = vadd.f32 %v1079, %v1154
    %v1158 = vtanh.pop %v1157
    %v1159 = vld [vmem:[%s311] sm:$0x3]
    %v1161 = vsel %vm234, %v1158, 0
    %1163 = vmatprep.subr.mxu0 0.0
    %1164 = vmatpush1.msra.mxu0 0.0
    %1165 = vmatprep.subr.mxu0 0.0
    %1166 = vmatpush1.msra.mxu0 0.0
    %1167 = vmatprep.subr.mxu0 0.0
    %1168 = vmatpush1.msra.mxu0 0.0
    %1169 = vmatprep.subr.mxu0 0.0
    %1170 = vmatpush1.msra.mxu0 0.0
    %1171 = vmatprep.subr.mxu0 0.0
    %1172 = vmatpush1.msra.mxu0 0.0
    %1173 = vmatprep.subr.mxu0 0.0
    %1174 = vmatpush1.msra.mxu0 0.0
    %1175 = vmatprep.subr.mxu0 0.0
    %1176 = vmatpush1.msra.mxu0 0.0
    %1177 = vmatprep.subr.mxu0 0.0
    %1178 = vmatpush1.msra.mxu0 0.0
    %1179 = vmatprep.subr.mxu0 0.0
    %1180 = vmatpush1.msra.mxu0 0.0
    %1181 = vmatprep.subr.mxu0 0.0
    %1182 = vmatpush1.msra.mxu0 0.0
    %1183 = vmatprep.subr.mxu0 0.0
    %1184 = vmatpush1.msra.mxu0 0.0
    %1185 = vmatprep.subr.mxu0 0.0
    %1186 = vmatpush1.msra.mxu0 0.0
    %1187 = vmatprep.subr.mxu0 0.0
    %1188 = vmatpush1.msra.mxu0 %v1083
    %1189 = vmatprep.subr.mxu0 0.0
    %1190 = vmatpush1.msra.mxu0 %v1082
    %1191 = vmatprep.subr.mxu0 0.0
    %1192 = vmatpush1.msra.mxu0 %v1081
    %1193 = vmatprep.subr.mxu0 0.0
    %1194 = vmatpush1.msra.mxu0 %v1080
    %1195 = vmatprep.subr.mxu0 0.0
    %1196 = vmatpush2.msra.mxu0 0.0
    %1197 = vmatprep.subr.mxu0 0.0
    %1198 = vmatpush2.msra.mxu0 0.0
    %1199 = vmatprep.subr.mxu0 0.0
    %1200 = vmatpush2.msra.mxu0 0.0
    %1201 = vmatprep.subr.mxu0 0.0
    %1202 = vmatpush2.msra.mxu0 0.0
    %1203 = vmatprep.subr.mxu0 0.0
    %1204 = vmatpush2.msra.mxu0 0.0
    %1205 = vmatprep.subr.mxu0 0.0
    %1206 = vmatpush2.msra.mxu0 0.0
    %1207 = vmatprep.subr.mxu0 0.0
    %1208 = vmatpush2.msra.mxu0 0.0
    %1209 = vmatprep.subr.mxu0 0.0
    %1210 = vmatpush2.msra.mxu0 0.0
    %1211 = vmatprep.subr.mxu0 0.0
    %1212 = vmatpush2.msra.mxu0 0.0
    %1213 = vmatprep.subr.mxu0 0.0
    %1214 = vmatpush2.msra.mxu0 0.0
    %1215 = vmatprep.subr.mxu0 0.0
    %1216 = vmatpush2.msra.mxu0 0.0
    %1217 = vmatprep.subr.mxu0 0.0
    %1218 = vmatpush2.msra.mxu0 0.0
    %1219 = vmatprep.subr.mxu0 0.0
    %1220 = vmatpush2.msra.mxu0 0.0
    %1221 = vmatprep.subr.mxu0 0.0
    %1222 = vmatpush2.msra.mxu0 0.0
    %1223 = vmatprep.subr.mxu0 0.0
    %1224 = vmatpush2.msra.mxu0 0.0
    %1225 = vmatprep.subr.mxu0 0.0
    %1226 = vmatpush2.msra.mxu0 0.0
    %1227 = vmatprep.mubr.f32.mxu0 0.0
    %1228 = vmatmul.mubr.f32.gmra.mxu0 %v1161
    %v1229 = vpop.f32.mrf.mxu0
    %v1230 = vadd.f32 0.0, %v1229
    %v1231 = vpop.f32.mrf.mxu0
    %1232 = vdwg.mxu0
    %v1233 = vadd.f32 %v1159, %v1230
    %v1234 = vtanh.pop %v1233
    %v1235 = vld [vmem:[%s393] sm:$0x3]
    %v1237 = vsel %vm234, %v1234, 0
    %1239 = vmatprep.subr.mxu0 0.0
    %1240 = vmatpush1.msra.mxu0 0.0
    %1241 = vmatprep.subr.mxu0 0.0
    %1242 = vmatpush1.msra.mxu0 0.0
    %1243 = vmatprep.subr.mxu0 0.0
    %1244 = vmatpush1.msra.mxu0 0.0
    %1245 = vmatprep.subr.mxu0 0.0
    %1246 = vmatpush1.msra.mxu0 0.0
    %1247 = vmatprep.subr.mxu0 0.0
    %1248 = vmatpush1.msra.mxu0 0.0
    %1249 = vmatprep.subr.mxu0 0.0
    %1250 = vmatpush1.msra.mxu0 0.0
    %1251 = vmatprep.subr.mxu0 0.0
    %1252 = vmatpush1.msra.mxu0 0.0
    %1253 = vmatprep.subr.mxu0 0.0
    %1254 = vmatpush1.msra.mxu0 0.0
    %1255 = vmatprep.subr.mxu0 0.0
    %1256 = vmatpush1.msra.mxu0 0.0
    %1257 = vmatprep.subr.mxu0 0.0
    %1258 = vmatpush1.msra.mxu0 0.0
    %1259 = vmatprep.subr.mxu0 0.0
    %1260 = vmatpush1.msra.mxu0 0.0
    %1261 = vmatprep.subr.mxu0 0.0
    %1262 = vmatpush1.msra.mxu0 0.0
    %1263 = vmatprep.subr.mxu0 0.0
    %1264 = vmatpush1.msra.mxu0 %v1083
    %1265 = vmatprep.subr.mxu0 0.0
    %1266 = vmatpush1.msra.mxu0 %v1082
    %1267 = vmatprep.subr.mxu0 0.0
    %1268 = vmatpush1.msra.mxu0 %v1081
    %1269 = vmatprep.subr.mxu0 0.0
    %1270 = vmatpush1.msra.mxu0 %v1080
    %1271 = vmatprep.subr.mxu0 0.0
    %1272 = vmatpush2.msra.mxu0 0.0
    %1273 = vmatprep.subr.mxu0 0.0
    %1274 = vmatpush2.msra.mxu0 0.0
    %1275 = vmatprep.subr.mxu0 0.0
    %1276 = vmatpush2.msra.mxu0 0.0
    %1277 = vmatprep.subr.mxu0 0.0
    %1278 = vmatpush2.msra.mxu0 0.0
    %1279 = vmatprep.subr.mxu0 0.0
    %1280 = vmatpush2.msra.mxu0 0.0
    %1281 = vmatprep.subr.mxu0 0.0
    %1282 = vmatpush2.msra.mxu0 0.0
    %1283 = vmatprep.subr.mxu0 0.0
    %1284 = vmatpush2.msra.mxu0 0.0
    %1285 = vmatprep.subr.mxu0 0.0
    %1286 = vmatpush2.msra.mxu0 0.0
    %1287 = vmatprep.subr.mxu0 0.0
    %1288 = vmatpush2.msra.mxu0 0.0
    %1289 = vmatprep.subr.mxu0 0.0
    %1290 = vmatpush2.msra.mxu0 0.0
    %1291 = vmatprep.subr.mxu0 0.0
    %1292 = vmatpush2.msra.mxu0 0.0
    %1293 = vmatprep.subr.mxu0 0.0
    %1294 = vmatpush2.msra.mxu0 0.0
    %1295 = vmatprep.subr.mxu0 0.0
    %1296 = vmatpush2.msra.mxu0 0.0
    %1297 = vmatprep.subr.mxu0 0.0
    %1298 = vmatpush2.msra.mxu0 0.0
    %1299 = vmatprep.subr.mxu0 0.0
    %1300 = vmatpush2.msra.mxu0 0.0
    %1301 = vmatprep.subr.mxu0 0.0
    %1302 = vmatpush2.msra.mxu0 0.0
    %1303 = vmatprep.mubr.f32.mxu0 0.0
    %1304 = vmatmul.mubr.f32.gmra.mxu0 %v1237
    %v1305 = vpop.f32.mrf.mxu0
    %v1306 = vadd.f32 0.0, %v1305
    %v1307 = vpop.f32.mrf.mxu0
    %1308 = vdwg.mxu0
    %v1309 = vadd.f32 %v1235, %v1306
    %v1310 = vtanh.pop %v1309
    %v1311 = vld [vmem:[%s475] sm:$0x3]
    %v1313 = vsel %vm234, %v1310, 0
    %1315 = vmatprep.subr.mxu0 0.0
    %1316 = vmatpush1.msra.mxu0 0.0
    %1317 = vmatprep.subr.mxu0 0.0
    %1318 = vmatpush1.msra.mxu0 0.0
    %1319 = vmatprep.subr.mxu0 0.0
    %1320 = vmatpush1.msra.mxu0 0.0
    %1321 = vmatprep.subr.mxu0 0.0
    %1322 = vmatpush1.msra.mxu0 0.0
    %1323 = vmatprep.subr.mxu0 0.0
    %1324 = vmatpush1.msra.mxu0 0.0
    %1325 = vmatprep.subr.mxu0 0.0
    %1326 = vmatpush1.msra.mxu0 0.0
    %1327 = vmatprep.subr.mxu0 0.0
    %1328 = vmatpush1.msra.mxu0 0.0
    %1329 = vmatprep.subr.mxu0 0.0
    %1330 = vmatpush1.msra.mxu0 0.0
    %1331 = vmatprep.subr.mxu0 0.0
    %1332 = vmatpush1.msra.mxu0 0.0
    %1333 = vmatprep.subr.mxu0 0.0
    %1334 = vmatpush1.msra.mxu0 0.0
    %1335 = vmatprep.subr.mxu0 0.0
    %1336 = vmatpush1.msra.mxu0 0.0
    %1337 = vmatprep.subr.mxu0 0.0
    %1338 = vmatpush1.msra.mxu0 0.0
    %1339 = vmatprep.subr.mxu0 0.0
    %1340 = vmatpush1.msra.mxu0 %v1083
    %1341 = vmatprep.subr.mxu0 0.0
    %1342 = vmatpush1.msra.mxu0 %v1082
    %1343 = vmatprep.subr.mxu0 0.0
    %1344 = vmatpush1.msra.mxu0 %v1081
    %1345 = vmatprep.subr.mxu0 0.0
    %1346 = vmatpush1.msra.mxu0 %v1080
    %1347 = vmatprep.subr.mxu0 0.0
    %1348 = vmatpush2.msra.mxu0 0.0
    %1349 = vmatprep.subr.mxu0 0.0
    %1350 = vmatpush2.msra.mxu0 0.0
    %1351 = vmatprep.subr.mxu0 0.0
    %1352 = vmatpush2.msra.mxu0 0.0
    %1353 = vmatprep.subr.mxu0 0.0
    %1354 = vmatpush2.msra.mxu0 0.0
    %1355 = vmatprep.subr.mxu0 0.0
    %1356 = vmatpush2.msra.mxu0 0.0
    %1357 = vmatprep.subr.mxu0 0.0
    %1358 = vmatpush2.msra.mxu0 0.0
    %1359 = vmatprep.subr.mxu0 0.0
    %1360 = vmatpush2.msra.mxu0 0.0
    %1361 = vmatprep.subr.mxu0 0.0
    %1362 = vmatpush2.msra.mxu0 0.0
    %1363 = vmatprep.subr.mxu0 0.0
    %1364 = vmatpush2.msra.mxu0 0.0
    %1365 = vmatprep.subr.mxu0 0.0
    %1366 = vmatpush2.msra.mxu0 0.0
    %1367 = vmatprep.subr.mxu0 0.0
    %1368 = vmatpush2.msra.mxu0 0.0
    %1369 = vmatprep.subr.mxu0 0.0
    %1370 = vmatpush2.msra.mxu0 0.0
    %1371 = vmatprep.subr.mxu0 0.0
    %1372 = vmatpush2.msra.mxu0 0.0
    %1373 = vmatprep.subr.mxu0 0.0
    %1374 = vmatpush2.msra.mxu0 0.0
    %1375 = vmatprep.subr.mxu0 0.0
    %1376 = vmatpush2.msra.mxu0 0.0
    %1377 = vmatprep.subr.mxu0 0.0
    %1378 = vmatpush2.msra.mxu0 0.0
    %1379 = vmatprep.mubr.f32.mxu0 0.0
    %1380 = vmatmul.mubr.f32.gmra.mxu0 %v1313
    %v1381 = vpop.f32.mrf.mxu0
    %v1382 = vadd.f32 0.0, %v1381
    %v1383 = vpop.f32.mrf.mxu0
    %1384 = vdwg.mxu0
    %v1385 = vadd.f32 %v1311, %v1382
    %v1386 = vtanh.pop %v1385
    %v1387 = vld [vmem:[%s557] sm:$0x3]
    %v1389 = vsel %vm234, %v1386, 0
    %1391 = vmatprep.subr.mxu0 0.0
    %1392 = vmatpush1.msra.mxu0 0.0
    %1393 = vmatprep.subr.mxu0 0.0
    %1394 = vmatpush1.msra.mxu0 0.0
    %1395 = vmatprep.subr.mxu0 0.0
    %1396 = vmatpush1.msra.mxu0 0.0
    %1397 = vmatprep.subr.mxu0 0.0
    %1398 = vmatpush1.msra.mxu0 0.0
    %1399 = vmatprep.subr.mxu0 0.0
    %1400 = vmatpush1.msra.mxu0 0.0
    %1401 = vmatprep.subr.mxu0 0.0
    %1402 = vmatpush1.msra.mxu0 0.0
    %1403 = vmatprep.subr.mxu0 0.0
    %1404 = vmatpush1.msra.mxu0 0.0
    %1405 = vmatprep.subr.mxu0 0.0
    %1406 = vmatpush1.msra.mxu0 0.0
    %1407 = vmatprep.subr.mxu0 0.0
    %1408 = vmatpush1.msra.mxu0 0.0
    %1409 = vmatprep.subr.mxu0 0.0
    %1410 = vmatpush1.msra.mxu0 0.0
    %1411 = vmatprep.subr.mxu0 0.0
    %1412 = vmatpush1.msra.mxu0 0.0
    %1413 = vmatprep.subr.mxu0 0.0
    %1414 = vmatpush1.msra.mxu0 0.0
    %1415 = vmatprep.subr.mxu0 0.0
    %1416 = vmatpush1.msra.mxu0 %v1083
    %1417 = vmatprep.subr.mxu0 0.0
    %1418 = vmatpush1.msra.mxu0 %v1082
    %1419 = vmatprep.subr.mxu0 0.0
    %1420 = vmatpush1.msra.mxu0 %v1081
    %1421 = vmatprep.subr.mxu0 0.0
    %1422 = vmatpush1.msra.mxu0 %v1080
    %1423 = vmatprep.subr.mxu0 0.0
    %1424 = vmatpush2.msra.mxu0 0.0
    %1425 = vmatprep.subr.mxu0 0.0
    %1426 = vmatpush2.msra.mxu0 0.0
    %1427 = vmatprep.subr.mxu0 0.0
    %1428 = vmatpush2.msra.mxu0 0.0
    %1429 = vmatprep.subr.mxu0 0.0
    %1430 = vmatpush2.msra.mxu0 0.0
    %1431 = vmatprep.subr.mxu0 0.0
    %1432 = vmatpush2.msra.mxu0 0.0
    %1433 = vmatprep.subr.mxu0 0.0
    %1434 = vmatpush2.msra.mxu0 0.0
    %1435 = vmatprep.subr.mxu0 0.0
    %1436 = vmatpush2.msra.mxu0 0.0
    %1437 = vmatprep.subr.mxu0 0.0
    %1438 = vmatpush2.msra.mxu0 0.0
    %1439 = vmatprep.subr.mxu0 0.0
    %1440 = vmatpush2.msra.mxu0 0.0
    %1441 = vmatprep.subr.mxu0 0.0
    %1442 = vmatpush2.msra.mxu0 0.0
    %1443 = vmatprep.subr.mxu0 0.0
    %1444 = vmatpush2.msra.mxu0 0.0
    %1445 = vmatprep.subr.mxu0 0.0
    %1446 = vmatpush2.msra.mxu0 0.0
    %1447 = vmatprep.subr.mxu0 0.0
    %1448 = vmatpush2.msra.mxu0 0.0
    %1449 = vmatprep.subr.mxu0 0.0
    %1450 = vmatpush2.msra.mxu0 0.0
    %1451 = vmatprep.subr.mxu0 0.0
    %1452 = vmatpush2.msra.mxu0 0.0
    %1453 = vmatprep.subr.mxu0 0.0
    %1454 = vmatpush2.msra.mxu0 0.0
    %1455 = vmatprep.mubr.f32.mxu0 0.0
    %1456 = vmatmul.mubr.f32.gmra.mxu0 %v1389
    %v1457 = vpop.f32.mrf.mxu0
    %v1458 = vadd.f32 0.0, %v1457
    %v1459 = vpop.f32.mrf.mxu0
    %1460 = vdwg.mxu0
    %v1461 = vadd.f32 %v1387, %v1458
    %v1462 = vtanh.pop %v1461
    %v1463 = vld [vmem:[%s639] sm:$0x3]
    %v1465 = vsel %vm234, %v1462, 0
    %1467 = vmatprep.subr.mxu0 0.0
    %1468 = vmatpush1.msra.mxu0 0.0
    %1469 = vmatprep.subr.mxu0 0.0
    %1470 = vmatpush1.msra.mxu0 0.0
    %1471 = vmatprep.subr.mxu0 0.0
    %1472 = vmatpush1.msra.mxu0 0.0
    %1473 = vmatprep.subr.mxu0 0.0
    %1474 = vmatpush1.msra.mxu0 0.0
    %1475 = vmatprep.subr.mxu0 0.0
    %1476 = vmatpush1.msra.mxu0 0.0
    %1477 = vmatprep.subr.mxu0 0.0
    %1478 = vmatpush1.msra.mxu0 0.0
    %1479 = vmatprep.subr.mxu0 0.0
    %1480 = vmatpush1.msra.mxu0 0.0
    %1481 = vmatprep.subr.mxu0 0.0
    %1482 = vmatpush1.msra.mxu0 0.0
    %1483 = vmatprep.subr.mxu0 0.0
    %1484 = vmatpush1.msra.mxu0 0.0
    %1485 = vmatprep.subr.mxu0 0.0
    %1486 = vmatpush1.msra.mxu0 0.0
    %1487 = vmatprep.subr.mxu0 0.0
    %1488 = vmatpush1.msra.mxu0 0.0
    %1489 = vmatprep.subr.mxu0 0.0
    %1490 = vmatpush1.msra.mxu0 0.0
    %1491 = vmatprep.subr.mxu0 0.0
    %1492 = vmatpush1.msra.mxu0 %v1083
    %1493 = vmatprep.subr.mxu0 0.0
    %1494 = vmatpush1.msra.mxu0 %v1082
    %1495 = vmatprep.subr.mxu0 0.0
    %1496 = vmatpush1.msra.mxu0 %v1081
    %1497 = vmatprep.subr.mxu0 0.0
    %1498 = vmatpush1.msra.mxu0 %v1080
    %1499 = vmatprep.subr.mxu0 0.0
    %1500 = vmatpush2.msra.mxu0 0.0
    %1501 = vmatprep.subr.mxu0 0.0
    %1502 = vmatpush2.msra.mxu0 0.0
    %1503 = vmatprep.subr.mxu0 0.0
    %1504 = vmatpush2.msra.mxu0 0.0
    %1505 = vmatprep.subr.mxu0 0.0
    %1506 = vmatpush2.msra.mxu0 0.0
    %1507 = vmatprep.subr.mxu0 0.0
    %1508 = vmatpush2.msra.mxu0 0.0
    %1509 = vmatprep.subr.mxu0 0.0
    %1510 = vmatpush2.msra.mxu0 0.0
    %1511 = vmatprep.subr.mxu0 0.0
    %1512 = vmatpush2.msra.mxu0 0.0
    %1513 = vmatprep.subr.mxu0 0.0
    %1514 = vmatpush2.msra.mxu0 0.0
    %1515 = vmatprep.subr.mxu0 0.0
    %1516 = vmatpush2.msra.mxu0 0.0
    %1517 = vmatprep.subr.mxu0 0.0
    %1518 = vmatpush2.msra.mxu0 0.0
    %1519 = vmatprep.subr.mxu0 0.0
    %1520 = vmatpush2.msra.mxu0 0.0
    %1521 = vmatprep.subr.mxu0 0.0
    %1522 = vmatpush2.msra.mxu0 0.0
    %1523 = vmatprep.subr.mxu0 0.0
    %1524 = vmatpush2.msra.mxu0 0.0
    %1525 = vmatprep.subr.mxu0 0.0
    %1526 = vmatpush2.msra.mxu0 0.0
    %1527 = vmatprep.subr.mxu0 0.0
    %1528 = vmatpush2.msra.mxu0 0.0
    %1529 = vmatprep.subr.mxu0 0.0
    %1530 = vmatpush2.msra.mxu0 0.0
    %1531 = vmatprep.mubr.f32.mxu0 0.0
    %1532 = vmatmul.mubr.f32.gmra.mxu0 %v1465
    %v1533 = vpop.f32.mrf.mxu0
    %v1534 = vadd.f32 0.0, %v1533
    %v1535 = vpop.f32.mrf.mxu0
    %1536 = vdwg.mxu0
    %v1537 = vadd.f32 %v1463, %v1534
    %v1538 = vtanh.pop %v1537
    %v1539 = vld [vmem:[%s721] sm:$0x3]
    %v1541 = vsel %vm234, %v1538, 0
    %1543 = vmatprep.subr.mxu0 0.0
    %1544 = vmatpush1.msra.mxu0 0.0
    %1545 = vmatprep.subr.mxu0 0.0
    %1546 = vmatpush1.msra.mxu0 0.0
    %1547 = vmatprep.subr.mxu0 0.0
    %1548 = vmatpush1.msra.mxu0 0.0
    %1549 = vmatprep.subr.mxu0 0.0
    %1550 = vmatpush1.msra.mxu0 0.0
    %1551 = vmatprep.subr.mxu0 0.0
    %1552 = vmatpush1.msra.mxu0 0.0
    %1553 = vmatprep.subr.mxu0 0.0
    %1554 = vmatpush1.msra.mxu0 0.0
    %1555 = vmatprep.subr.mxu0 0.0
    %1556 = vmatpush1.msra.mxu0 0.0
    %1557 = vmatprep.subr.mxu0 0.0
    %1558 = vmatpush1.msra.mxu0 0.0
    %1559 = vmatprep.subr.mxu0 0.0
    %1560 = vmatpush1.msra.mxu0 0.0
    %1561 = vmatprep.subr.mxu0 0.0
    %1562 = vmatpush1.msra.mxu0 0.0
    %1563 = vmatprep.subr.mxu0 0.0
    %1564 = vmatpush1.msra.mxu0 0.0
    %1565 = vmatprep.subr.mxu0 0.0
    %1566 = vmatpush1.msra.mxu0 0.0
    %1567 = vmatprep.subr.mxu0 0.0
    %1568 = vmatpush1.msra.mxu0 %v1083
    %1569 = vmatprep.subr.mxu0 0.0
    %1570 = vmatpush1.msra.mxu0 %v1082
    %1571 = vmatprep.subr.mxu0 0.0
    %1572 = vmatpush1.msra.mxu0 %v1081
    %1573 = vmatprep.subr.mxu0 0.0
    %1574 = vmatpush1.msra.mxu0 %v1080
    %1575 = vmatprep.subr.mxu0 0.0
    %1576 = vmatpush2.msra.mxu0 0.0
    %1577 = vmatprep.subr.mxu0 0.0
    %1578 = vmatpush2.msra.mxu0 0.0
    %1579 = vmatprep.subr.mxu0 0.0
    %1580 = vmatpush2.msra.mxu0 0.0
    %1581 = vmatprep.subr.mxu0 0.0
    %1582 = vmatpush2.msra.mxu0 0.0
    %1583 = vmatprep.subr.mxu0 0.0
    %1584 = vmatpush2.msra.mxu0 0.0
    %1585 = vmatprep.subr.mxu0 0.0
    %1586 = vmatpush2.msra.mxu0 0.0
    %1587 = vmatprep.subr.mxu0 0.0
    %1588 = vmatpush2.msra.mxu0 0.0
    %1589 = vmatprep.subr.mxu0 0.0
    %1590 = vmatpush2.msra.mxu0 0.0
    %1591 = vmatprep.subr.mxu0 0.0
    %1592 = vmatpush2.msra.mxu0 0.0
    %1593 = vmatprep.subr.mxu0 0.0
    %1594 = vmatpush2.msra.mxu0 0.0
    %1595 = vmatprep.subr.mxu0 0.0
    %1596 = vmatpush2.msra.mxu0 0.0
    %1597 = vmatprep.subr.mxu0 0.0
    %1598 = vmatpush2.msra.mxu0 0.0
    %1599 = vmatprep.subr.mxu0 0.0
    %1600 = vmatpush2.msra.mxu0 0.0
    %1601 = vmatprep.subr.mxu0 0.0
    %1602 = vmatpush2.msra.mxu0 0.0
    %1603 = vmatprep.subr.mxu0 0.0
    %1604 = vmatpush2.msra.mxu0 0.0
    %1605 = vmatprep.subr.mxu0 0.0
    %1606 = vmatpush2.msra.mxu0 0.0
    %1607 = vmatprep.mubr.f32.mxu0 0.0
    %1608 = vmatmul.mubr.f32.gmra.mxu0 %v1541
    %v1609 = vpop.f32.mrf.mxu0
    %v1610 = vadd.f32 0.0, %v1609
    %v1611 = vpop.f32.mrf.mxu0
    %1612 = vdwg.mxu0
    %v1613 = vadd.f32 %v1539, %v1610
    %v1614 = vtanh.pop %v1613
    %v1615 = vld [vmem:[%s803] sm:$0x3]
    %v1617 = vsel %vm234, %v1614, 0
    %1619 = vmatprep.subr.mxu0 0.0
    %1620 = vmatpush1.msra.mxu0 0.0
    %1621 = vmatprep.subr.mxu0 0.0
    %1622 = vmatpush1.msra.mxu0 0.0
    %1623 = vmatprep.subr.mxu0 0.0
    %1624 = vmatpush1.msra.mxu0 0.0
    %1625 = vmatprep.subr.mxu0 0.0
    %1626 = vmatpush1.msra.mxu0 0.0
    %1627 = vmatprep.subr.mxu0 0.0
    %1628 = vmatpush1.msra.mxu0 0.0
    %1629 = vmatprep.subr.mxu0 0.0
    %1630 = vmatpush1.msra.mxu0 0.0
    %1631 = vmatprep.subr.mxu0 0.0
    %1632 = vmatpush1.msra.mxu0 0.0
    %1633 = vmatprep.subr.mxu0 0.0
    %1634 = vmatpush1.msra.mxu0 0.0
    %1635 = vmatprep.subr.mxu0 0.0
    %1636 = vmatpush1.msra.mxu0 0.0
    %1637 = vmatprep.subr.mxu0 0.0
    %1638 = vmatpush1.msra.mxu0 0.0
    %1639 = vmatprep.subr.mxu0 0.0
    %1640 = vmatpush1.msra.mxu0 0.0
    %1641 = vmatprep.subr.mxu0 0.0
    %1642 = vmatpush1.msra.mxu0 0.0
    %1643 = vmatprep.subr.mxu0 0.0
    %1644 = vmatpush1.msra.mxu0 %v1083
    %1645 = vmatprep.subr.mxu0 0.0
    %1646 = vmatpush1.msra.mxu0 %v1082
    %1647 = vmatprep.subr.mxu0 0.0
    %1648 = vmatpush1.msra.mxu0 %v1081
    %1649 = vmatprep.subr.mxu0 0.0
    %1650 = vmatpush1.msra.mxu0 %v1080
    %1651 = vmatprep.subr.mxu0 0.0
    %1652 = vmatpush2.msra.mxu0 0.0
    %1653 = vmatprep.subr.mxu0 0.0
    %1654 = vmatpush2.msra.mxu0 0.0
    %1655 = vmatprep.subr.mxu0 0.0
    %1656 = vmatpush2.msra.mxu0 0.0
    %1657 = vmatprep.subr.mxu0 0.0
    %1658 = vmatpush2.msra.mxu0 0.0
    %1659 = vmatprep.subr.mxu0 0.0
    %1660 = vmatpush2.msra.mxu0 0.0
    %1661 = vmatprep.subr.mxu0 0.0
    %1662 = vmatpush2.msra.mxu0 0.0
    %1663 = vmatprep.subr.mxu0 0.0
    %1664 = vmatpush2.msra.mxu0 0.0
    %1665 = vmatprep.subr.mxu0 0.0
    %1666 = vmatpush2.msra.mxu0 0.0
    %1667 = vmatprep.subr.mxu0 0.0
    %1668 = vmatpush2.msra.mxu0 0.0
    %1669 = vmatprep.subr.mxu0 0.0
    %1670 = vmatpush2.msra.mxu0 0.0
    %1671 = vmatprep.subr.mxu0 0.0
    %1672 = vmatpush2.msra.mxu0 0.0
    %1673 = vmatprep.subr.mxu0 0.0
    %1674 = vmatpush2.msra.mxu0 0.0
    %1675 = vmatprep.subr.mxu0 0.0
    %1676 = vmatpush2.msra.mxu0 0.0
    %1677 = vmatprep.subr.mxu0 0.0
    %1678 = vmatpush2.msra.mxu0 0.0
    %1679 = vmatprep.subr.mxu0 0.0
    %1680 = vmatpush2.msra.mxu0 0.0
    %1681 = vmatprep.subr.mxu0 0.0
    %1682 = vmatpush2.msra.mxu0 0.0
    %1683 = vmatprep.mubr.f32.mxu0 0.0
    %1684 = vmatmul.mubr.f32.gmra.mxu0 %v1617
    %v1685 = vpop.f32.mrf.mxu0
    %v1686 = vadd.f32 0.0, %v1685
    %v1687 = vpop.f32.mrf.mxu0
    %1688 = vdwg.mxu0
    %v1689 = vadd.f32 %v1615, %v1686
    %v1690 = vtanh.pop %v1689
    %v1691 = vld [vmem:[%s8] sm:$0xff]
    %v1692 = vld [vmem:[%s8 + $0x8] sm:$0xff]
    %v1693 = vld [vmem:[%s8 + $0x10] sm:$0xff]
    %v1694 = vld [vmem:[%s8 + $0x18] sm:$0xff]
    %v1695 = vld [vmem:[%s9] sm:$0x1]
    %v1697 = vlaneseq
    %v1698 = vshrl.u32 %v1697, 7
    %v1699 = vsub.s32 0, %v1698
    %v1700 = vrot.slane %v1695, %v1699
    %v1703 = vsel %vm234, %v1690, 0
    %1705 = vmatprep.subr.mxu0 0.0
    %1706 = vmatpush1.msra.mxu0 0.0
    %1707 = vmatprep.subr.mxu0 0.0
    %1708 = vmatpush1.msra.mxu0 0.0
    %1709 = vmatprep.subr.mxu0 0.0
    %1710 = vmatpush1.msra.mxu0 0.0
    %1711 = vmatprep.subr.mxu0 0.0
    %1712 = vmatpush1.msra.mxu0 0.0
    %1713 = vmatprep.subr.mxu0 0.0
    %1714 = vmatpush1.msra.mxu0 0.0
    %1715 = vmatprep.subr.mxu0 0.0
    %1716 = vmatpush1.msra.mxu0 0.0
    %1717 = vmatprep.subr.mxu0 0.0
    %1718 = vmatpush1.msra.mxu0 0.0
    %1719 = vmatprep.subr.mxu0 0.0
    %1720 = vmatpush1.msra.mxu0 0.0
    %1721 = vmatprep.subr.mxu0 0.0
    %1722 = vmatpush1.msra.mxu0 0.0
    %1723 = vmatprep.subr.mxu0 0.0
    %1724 = vmatpush1.msra.mxu0 0.0
    %1725 = vmatprep.subr.mxu0 0.0
    %1726 = vmatpush1.msra.mxu0 0.0
    %1727 = vmatprep.subr.mxu0 0.0
    %1728 = vmatpush1.msra.mxu0 0.0
    %1729 = vmatprep.subr.mxu0 0.0
    %1730 = vmatpush1.msra.mxu0 %v1694
    %1731 = vmatprep.subr.mxu0 0.0
    %1732 = vmatpush1.msra.mxu0 %v1693
    %1733 = vmatprep.subr.mxu0 0.0
    %1734 = vmatpush1.msra.mxu0 %v1692
    %1735 = vmatprep.subr.mxu0 0.0
    %1736 = vmatpush1.msra.mxu0 %v1691
    %1737 = vmatprep.subr.mxu0 0.0
    %1738 = vmatpush2.msra.mxu0 0.0
    %1739 = vmatprep.subr.mxu0 0.0
    %1740 = vmatpush2.msra.mxu0 0.0
    %1741 = vmatprep.subr.mxu0 0.0
    %1742 = vmatpush2.msra.mxu0 0.0
    %1743 = vmatprep.subr.mxu0 0.0
    %1744 = vmatpush2.msra.mxu0 0.0
    %1745 = vmatprep.subr.mxu0 0.0
    %1746 = vmatpush2.msra.mxu0 0.0
    %1747 = vmatprep.subr.mxu0 0.0
    %1748 = vmatpush2.msra.mxu0 0.0
    %1749 = vmatprep.subr.mxu0 0.0
    %1750 = vmatpush2.msra.mxu0 0.0
    %1751 = vmatprep.subr.mxu0 0.0
    %1752 = vmatpush2.msra.mxu0 0.0
    %1753 = vmatprep.subr.mxu0 0.0
    %1754 = vmatpush2.msra.mxu0 0.0
    %1755 = vmatprep.subr.mxu0 0.0
    %1756 = vmatpush2.msra.mxu0 0.0
    %1757 = vmatprep.subr.mxu0 0.0
    %1758 = vmatpush2.msra.mxu0 0.0
    %1759 = vmatprep.subr.mxu0 0.0
    %1760 = vmatpush2.msra.mxu0 0.0
    %1761 = vmatprep.subr.mxu0 0.0
    %1762 = vmatpush2.msra.mxu0 0.0
    %1763 = vmatprep.subr.mxu0 0.0
    %1764 = vmatpush2.msra.mxu0 0.0
    %1765 = vmatprep.subr.mxu0 0.0
    %1766 = vmatpush2.msra.mxu0 0.0
    %1767 = vmatprep.subr.mxu0 0.0
    %1768 = vmatpush2.msra.mxu0 0.0
    %1769 = vmatprep.mubr.f32.mxu0 0.0
    %1770 = vmatmul.mubr.f32.gmra.mxu0 %v1703
    %v1771 = vpop.f32.mrf.mxu0
    %v1772 = vadd.f32 %v1700, %v1771
    %v1773 = vpop.f32.mrf.mxu0
    %1774 = vdwg.mxu0
    %vm1775 = vcmask 58368
    %1776 = vst.msk [vmem:[#allocation3] sm:$0x3] %vm1775, %v1772
    // Predicated region
    $region42: #{_rnn_forward.1} parent=1 // pred_check
      _
    $region43: #{_rnn_forward.1} parent=1 // pred_check_branch
      %1778 = sbr.rel (0) target = $region45
    $region44: #{_rnn_forward.1} parent=1 // pred_region
      %s1780 = ssub.s32 32, 32
      %1781 = vsyncadd [#allocation4], %s1780
      %s1783 = sshll.u32 [#allocation3], 4
      %s1784 = int_to_ptr.vmem [resolvable:$true] %s1783
      %1786 = dma.vmem_to_hbm [thread:$0]  %s1784, 32, %s10, [#allocation4]
    $region45: #{_rnn_forward.1} parent=1 // pred_fallthru
      _
    // Predicated region
    $region46: #{_rnn_forward.1} parent=1 // pred_check
      _
    $region47: #{_rnn_forward.1} parent=1 // pred_check_branch
      %1788 = sbr.rel (0) target = $region49
    $region48: #{_rnn_forward.1} parent=1 // pred_region
      %1789 = dma.done [#allocation4], 32
    $region49: #{_rnn_forward.1} parent=1 // pred_fallthru
      _
    %1790 = vsyncpa [#allocation4], 1

</llo_original>
